<compile_context>
chip_gen: v6e
topology: v6e:2x2x1
jax: 0.10.0
libtpu: 0.0.40
codegen_flags: <defaults>
</compile_context>

<pallas_src>
import functools

import jax
import jax.numpy as jnp
from jax import lax
from jax.experimental import pallas as pl
from jax.experimental.pallas import tpu as pltpu


def _round_up(x, m):
    return ((x + m - 1) // m) * m


# ----------------------------------------------------------------------------
# Kernel 1: batched embedding gather (Decoder.forward, mode='single')
# ----------------------------------------------------------------------------
def _gather_kernel(h_idx_ref, r_idx_ref, t_idx_ref,      # scalar prefetch (SMEM)
                   embs_hbm, wrel_hbm,                   # tables left in HBM
                   head_out, rel_out, tail_out,          # (TB, D) VMEM out blocks
                   hbuf, rbuf, tbuf, sems,               # scratch
                   *, tb):
    base = pl.program_id(0) * tb
    copies = []
    # Issue all 3*TB row DMAs before waiting so they are all in flight at once.
    for r in range(tb):
        hc = pltpu.make_async_copy(embs_hbm.at[h_idx_ref[base + r]],
                                   hbuf.at[r], sems.at[0, r])
        rc = pltpu.make_async_copy(wrel_hbm.at[r_idx_ref[base + r]],
                                   rbuf.at[r], sems.at[1, r])
        tc = pltpu.make_async_copy(embs_hbm.at[t_idx_ref[base + r]],
                                   tbuf.at[r], sems.at[2, r])
        hc.start(); rc.start(); tc.start()
        copies += [hc, rc, tc]
    for c in copies:
        c.wait()
    # Lane/sublane-dense (TB, D) stores (no singleton middle dim in-kernel).
    head_out[...] = hbuf[...]
    rel_out[...] = rbuf[...]
    tail_out[...] = tbuf[...]


def decoder_forward_single(embs, w_relation, sample, *, tb=8):
    """sample: int32 array [3, B] of (head, relation, tail) indices."""
    h_idx, r_idx, t_idx = sample[0], sample[1], sample[2]
    B = h_idx.shape[0]
    D = embs.shape[1]
    B_pad = _round_up(max(B, 1), tb)
    if B_pad != B:
        pad = B_pad - B
        h_idx = jnp.pad(h_idx, (0, pad))
        r_idx = jnp.pad(r_idx, (0, pad))
        t_idx = jnp.pad(t_idx, (0, pad))
    nb = B_pad // tb

    grid_spec = pltpu.PrefetchScalarGridSpec(
        num_scalar_prefetch=3,
        grid=(nb,),
        in_specs=[
            pl.BlockSpec(memory_space=pl.ANY),   # embs (shared by head & tail)
            pl.BlockSpec(memory_space=pl.ANY),   # w_relation
        ],
        out_specs=[
            pl.BlockSpec((tb, D), lambda i, h, r, t: (i, 0)),
            pl.BlockSpec((tb, D), lambda i, h, r, t: (i, 0)),
            pl.BlockSpec((tb, D), lambda i, h, r, t: (i, 0)),
        ],
        scratch_shapes=[
            pltpu.VMEM((tb, D), embs.dtype),
            pltpu.VMEM((tb, D), w_relation.dtype),
            pltpu.VMEM((tb, D), embs.dtype),
            pltpu.SemaphoreType.DMA((3, tb)),
        ],
    )
    out_shapes = (
        jax.ShapeDtypeStruct((B_pad, D), embs.dtype),
        jax.ShapeDtypeStruct((B_pad, D), w_relation.dtype),
        jax.ShapeDtypeStruct((B_pad, D), embs.dtype),
    )
    itemsize = jnp.dtype(embs.dtype).itemsize
    cost = pl.CostEstimate(
        flops=0, transcendentals=0,
        bytes_accessed=int(6 * B_pad * D * itemsize + 3 * B_pad * 4))

    head, rel, tail = pl.pallas_call(
        functools.partial(_gather_kernel, tb=tb),
        grid_spec=grid_spec,
        out_shape=out_shapes,
        compiler_params=pltpu.CompilerParams(
            dimension_semantics=("parallel",),
            vmem_limit_bytes=32 * 1024 * 1024),
        cost_estimate=cost,
    )(h_idx, r_idx, t_idx, embs, w_relation)

    # unsqueeze(1) in the wrapper for free; slice off any batch padding.
    return head[:B, None, :], rel[:B, None, :], tail[:B, None, :]


# ----------------------------------------------------------------------------
# Kernel 2: loss (adversarial negative sampling + logsigmoid), tiled over B
# ----------------------------------------------------------------------------
def _logsigmoid(x):
    # numerically stable log(sigmoid(x)) = min(x, 0) - log(1 + exp(-|x|))
    return jnp.minimum(x, 0.0) - jnp.log(1.0 + jnp.exp(-jnp.abs(x)))


def _loss_kernel(pos_ref, neg_ref, pos_out, neg_out,
                 *, adversarial, temperature, true_b, block_b):
    pid = pl.program_id(0)
    nb = pl.num_programs(0)

    @pl.when(pid == 0)
    def _():
        pos_out[...] = jnp.zeros_like(pos_out)
        neg_out[...] = jnp.zeros_like(neg_out)

    neg = neg_ref[...].astype(jnp.float32)       # (block_b, K)
    pos = pos_ref[...].astype(jnp.float32)       # (1, block_b)  lane-dense

    row0 = pid * block_b
    nmask = (row0 + lax.broadcasted_iota(jnp.int32, neg.shape[:1] + (1,), 0)) < true_b
    pmask = (row0 + lax.broadcasted_iota(jnp.int32, (1, block_b), 1)) < true_b

    if adversarial:
        z = neg * temperature
        z = z - jnp.max(z, axis=1, keepdims=True)
        e = jnp.exp(z)
        inv = pl.reciprocal(jnp.sum(e, axis=1, keepdims=True), approx=True)
        # forward of .detach() is identity (see TODO re: custom VJP)
        nrow = jnp.sum((e * inv) * _logsigmoid(-neg), axis=1, keepdims=True)
    else:
        nrow = jnp.mean(_logsigmoid(-neg), axis=1, keepdims=True)
    nrow = jnp.where(nmask, nrow, 0.0)                        # (block_b, 1)
    neg_out[...] += jnp.sum(nrow, axis=0, keepdims=True)      # (1, 1)

    prow = jnp.where(pmask, _logsigmoid(pos), 0.0)            # (1, block_b)
    pos_out[...] += jnp.sum(prow, axis=1, keepdims=True)      # (1, 1)

    @pl.when(pid == nb - 1)
    def _():
        pos_out[...] = -pos_out[...] * (1.0 / true_b)
        neg_out[...] = -neg_out[...] * (1.0 / true_b)


def _reg_kernel(w_ref, out_ref, *, denom):
    pid = pl.program_id(0)

    @pl.when(pid == 0)
    def _():
        out_ref[...] = jnp.zeros_like(out_ref)

    w = w_ref[...].astype(jnp.float32)                         # (tr, D)
    part = jnp.sum(w * w, axis=1, keepdims=True)               # (tr, 1)
    out_ref[...] += jnp.sum(part, axis=0, keepdims=True)       # (1, 1)

    @pl.when(pid == pl.num_programs(0) - 1)
    def _():
        out_ref[...] = out_ref[...] * (1.0 / denom)


def decoder_loss(positive_score, negative_score, w_relation, *,
                 adversarial, temperature, reg_param,
                 block_b=128, block_r=256):
    B, K = negative_score.shape
    R, D = w_relation.shape

    # --- regularizer mean(w_relation ** 2), tiled over relations ---------------
    tr = min(block_r, _round_up(R, 8))
    R_pad = _round_up(R, tr)
    wr = w_relation.astype(jnp.float32)
    if R_pad != R:
        wr = jnp.pad(wr, ((0, R_pad - R), (0, 0)))
    reg = pl.pallas_call(
        functools.partial(_reg_kernel, denom=float(R * D)),
        grid=(R_pad // tr,),
        in_specs=[pl.BlockSpec((tr, D), lambda i: (i, 0))],
        out_specs=pl.BlockSpec((1, 1), lambda i: (0, 0)),
        out_shape=jax.ShapeDtypeStruct((1, 1), jnp.float32),
        compiler_params=pltpu.CompilerParams(
            dimension_semantics=("arbitrary",),
            vmem_limit_bytes=32 * 1024 * 1024),
        cost_estimate=pl.CostEstimate(flops=int(2 * R_pad * D), transcendentals=0,
                                      bytes_accessed=int(R_pad * D * 4 + 4)),
    )(wr)[0, 0]

    if B == 0:  # matches reference: zero pos/neg losses, reg-only total
        zero = jnp.float32(0.0)
        return reg_param * reg, zero, zero

    # --- score losses, tiled over the batch ------------------------------------
    B_pad = _round_up(B, block_b)
    nb = B_pad // block_b
    pos = positive_score.reshape(B).astype(jnp.float32)
    pos = jnp.pad(pos, (0, B_pad - B)).reshape(1, B_pad)       # lane-packed
    neg = jnp.pad(negative_score.astype(jnp.float32), ((0, B_pad - B), (0, 0)))

    cost = pl.CostEstimate(
        flops=int(8 * B_pad * K + 4 * B_pad),
        transcendentals=int(3 * B_pad * K + 2 * B_pad),
        bytes_accessed=int(B_pad * K * 4 + B_pad * 4 + 8))
    pos_loss, neg_loss = pl.pallas_call(
        functools.partial(_loss_kernel, adversarial=bool(adversarial),
                          temperature=float(temperature),
                          true_b=int(B), block_b=block_b),
        grid=(nb,),
        in_specs=[
            pl.BlockSpec((1, block_b), lambda i: (0, i)),
            pl.BlockSpec((block_b, K), lambda i: (i, 0)),
        ],
        out_specs=[
            pl.BlockSpec((1, 1), lambda i: (0, 0)),
            pl.BlockSpec((1, 1), lambda i: (0, 0)),
        ],
        out_shape=(jax.ShapeDtypeStruct((1, 1), jnp.float32),
                   jax.ShapeDtypeStruct((1, 1), jnp.float32)),
        compiler_params=pltpu.CompilerParams(
            dimension_semantics=("arbitrary",),
            vmem_limit_bytes=32 * 1024 * 1024),
        cost_estimate=cost,
    )(pos, neg)
    pos_loss = pos_loss[0, 0]
    neg_loss = neg_loss[0, 0]

    loss = (pos_loss + neg_loss) * 0.5 + reg_param * reg
    return loss, pos_loss, neg_loss


# ----------------------------------------------------------------------------
# Pure-JAX references
# ----------------------------------------------------------------------------
def ref_forward_single(embs, w_relation, sample):
    h, r, t = sample[0], sample[1], sample[2]
    return embs[h][:, None, :], w_relation[r][:, None, :], embs[t][:, None, :]


def ref_loss(positive_score, negative_score, w_relation, *,
             adversarial, temperature, reg_param):
    if adversarial:
        sm = jax.nn.softmax(negative_score * temperature, axis=1)
        neg = jnp.sum(sm * jax.nn.log_sigmoid(-negative_score), axis=1)
    else:
        neg = jnp.mean(jax.nn.log_sigmoid(-negative_score), axis=1)
    pos = jnp.squeeze(jax.nn.log_sigmoid(positive_score), axis=1)
    pos_loss = -jnp.mean(pos)
    neg_loss = -jnp.mean(neg)
    reg = jnp.mean(w_relation ** 2)
    return (pos_loss + neg_loss) / 2 + reg_param * reg, pos_loss, neg_loss


# ----------------------------------------------------------------------------
# Demo
# ----------------------------------------------------------------------------
if __name__ == "__main__":
    key = jax.random.PRNGKey(0)
    k_emb, k_rel, k_h, k_r, k_t, k_pos, k_neg = jax.random.split(key, 7)

    num_entities = 16
    num_rels = 4
    h_dim = 128
    batch = 8
    neg_size = 8

    embs = jax.random.normal(k_emb, (num_entities, h_dim), dtype=jnp.float32)
    w_relation = jax.random.normal(k_rel, (num_rels, h_dim), dtype=jnp.float32)

    sample = jnp.stack([
        jax.random.randint(k_h, (batch,), 0, num_entities),
        jax.random.randint(k_r, (batch,), 0, num_rels),
        jax.random.randint(k_t, (batch,), 0, num_entities),
    ]).astype(jnp.int32)                                  # [3, B]

    positive_score = jax.random.normal(k_pos, (batch, 1), dtype=jnp.float32)
    negative_score = jax.random.normal(k_neg, (batch, neg_size), dtype=jnp.float32)

    adversarial = True
    temperature = 1.0
    reg_param = 0.01

    # forward gather (mode='single')
    head, relation, tail = decoder_forward_single(embs, w_relation, sample)
    jax.block_until_ready((head, relation, tail))

    # loss
    loss, pos_loss, neg_loss = decoder_loss(
        positive_score, negative_score, w_relation,
        adversarial=adversarial, temperature=temperature, reg_param=reg_param)
    jax.block_until_ready((loss, pos_loss, neg_loss))

    # check against pure-JAX references
    h_ref, r_ref, t_ref = ref_forward_single(embs, w_relation, sample)
    assert jnp.allclose(head, h_ref), "head gather mismatch"
    assert jnp.allclose(relation, r_ref), "relation gather mismatch"
    assert jnp.allclose(tail, t_ref), "tail gather mismatch"

    loss_r, pos_r, neg_r = ref_loss(
        positive_score, negative_score, w_relation,
        adversarial=adversarial, temperature=temperature, reg_param=reg_param)
    assert jnp.allclose(pos_loss, pos_r, atol=1e-5), (pos_loss, pos_r)
    # approx reciprocal in the adversarial softmax -> slightly looser tolerance
    assert jnp.allclose(neg_loss, neg_r, atol=2e-3, rtol=2e-3), (neg_loss, neg_r)
    assert jnp.allclose(loss, loss_r, atol=2e-3, rtol=2e-3), (loss, loss_r)

    print("KERNEL_OK")
</pallas_src>

<mosaic_0001>
module attributes {stable_mosaic.version = 11 : i64} {
  func.func @_gather_kernel(%arg0: i32, %arg1: memref<8xi32, #tpu.memory_space<smem>>, %arg2: memref<8xi32, #tpu.memory_space<smem>>, %arg3: memref<8xi32, #tpu.memory_space<smem>>, %arg4: memref<16x128xf32, #tpu.memory_space<any>>, %arg5: memref<4x128xf32, #tpu.memory_space<any>>, %arg6: memref<8x128xf32, #tpu.memory_space<vmem>>, %arg7: memref<8x128xf32, #tpu.memory_space<vmem>>, %arg8: memref<8x128xf32, #tpu.memory_space<vmem>>, %arg9: memref<8x128xf32, #tpu.memory_space<vmem>>, %arg10: memref<8x128xf32, #tpu.memory_space<vmem>>, %arg11: memref<8x128xf32, #tpu.memory_space<vmem>>, %arg12: memref<3x8x!tpu.dma_semaphore, #tpu.memory_space<semaphore_mem>>) attributes {dimension_semantics = [#tpu.dimension_semantics<parallel>], iteration_bounds = array<i64: 1>, scalar_prefetch = 3 : i64, scratch_operands = 4 : i64, tpu.core_type = #tpu.core_type<tc>, window_params = [{}, {}, {transform_indices = @transform_2, window_bounds = array<i64: 8, 128>}, {transform_indices = @transform_3, window_bounds = array<i64: 8, 128>}, {transform_indices = @transform_4, window_bounds = array<i64: 8, 128>}]} {
    %c8_i32 = arith.constant 8 : i32
    %0 = arith.muli %arg0, %c8_i32 : i32
    %c0_i32 = arith.constant 0 : i32
    %1 = arith.addi %0, %c0_i32 : i32
    %2 = arith.index_cast %1 : i32 to index
    %3 = memref.load %arg1[%2] : memref<8xi32, #tpu.memory_space<smem>>
    %c0_i32_0 = arith.constant 0 : i32
    %4 = arith.addi %0, %c0_i32_0 : i32
    %5 = arith.index_cast %4 : i32 to index
    %6 = memref.load %arg2[%5] : memref<8xi32, #tpu.memory_space<smem>>
    %c0_i32_1 = arith.constant 0 : i32
    %7 = arith.addi %0, %c0_i32_1 : i32
    %8 = arith.index_cast %7 : i32 to index
    %9 = memref.load %arg3[%8] : memref<8xi32, #tpu.memory_space<smem>>
    %c0_i32_2 = arith.constant 0 : i32
    %c0_i32_3 = arith.constant 0 : i32
    %c0_i32_4 = arith.constant 0 : i32
    %c0_i32_5 = arith.constant 0 : i32
    %10 = tpu.memref_slice %arg4[%3, %c0_i32_5] : memref<16x128xf32, #tpu.memory_space<any>> -> memref<1x128xf32, #tpu.memory_space<any>>
    %11 = tpu.memref_squeeze %10 : memref<1x128xf32, #tpu.memory_space<any>> -> memref<128xf32, #tpu.memory_space<any>>
    %c0_i32_6 = arith.constant 0 : i32
    %12 = tpu.memref_slice %arg9[%c0_i32_2, %c0_i32_6] : memref<8x128xf32, #tpu.memory_space<vmem>> -> memref<1x128xf32, #tpu.memory_space<vmem>>
    %13 = tpu.memref_squeeze %12 : memref<1x128xf32, #tpu.memory_space<vmem>> -> memref<128xf32, #tpu.memory_space<vmem>>
    %14 = tpu.memref_slice %arg12[%c0_i32_3, %c0_i32_4] : memref<3x8x!tpu.dma_semaphore, #tpu.memory_space<semaphore_mem>> -> memref<1x1x!tpu.dma_semaphore, #tpu.memory_space<semaphore_mem>>
    %15 = tpu.memref_squeeze %14 : memref<1x1x!tpu.dma_semaphore, #tpu.memory_space<semaphore_mem>> -> memref<!tpu.dma_semaphore, #tpu.memory_space<semaphore_mem>>
    tpu.enqueue_dma source(%11 : memref<128xf32, #tpu.memory_space<any>>) target(%13 : memref<128xf32, #tpu.memory_space<vmem>>) target_semaphore(%15 : memref<!tpu.dma_semaphore, #tpu.memory_space<semaphore_mem>>)
    %c0_i32_7 = arith.constant 0 : i32
    %c1_i32 = arith.constant 1 : i32
    %c0_i32_8 = arith.constant 0 : i32
    %c0_i32_9 = arith.constant 0 : i32
    %16 = tpu.memref_slice %arg5[%6, %c0_i32_9] : memref<4x128xf32, #tpu.memory_space<any>> -> memref<1x128xf32, #tpu.memory_space<any>>
    %17 = tpu.memref_squeeze %16 : memref<1x128xf32, #tpu.memory_space<any>> -> memref<128xf32, #tpu.memory_space<any>>
    %c0_i32_10 = arith.constant 0 : i32
    %18 = tpu.memref_slice %arg10[%c0_i32_7, %c0_i32_10] : memref<8x128xf32, #tpu.memory_space<vmem>> -> memref<1x128xf32, #tpu.memory_space<vmem>>
    %19 = tpu.memref_squeeze %18 : memref<1x128xf32, #tpu.memory_space<vmem>> -> memref<128xf32, #tpu.memory_space<vmem>>
    %20 = tpu.memref_slice %arg12[%c1_i32, %c0_i32_8] : memref<3x8x!tpu.dma_semaphore, #tpu.memory_space<semaphore_mem>> -> memref<1x1x!tpu.dma_semaphore, #tpu.memory_space<semaphore_mem>>
    %21 = tpu.memref_squeeze %20 : memref<1x1x!tpu.dma_semaphore, #tpu.memory_space<semaphore_mem>> -> memref<!tpu.dma_semaphore, #tpu.memory_space<semaphore_mem>>
    tpu.enqueue_dma source(%17 : memref<128xf32, #tpu.memory_space<any>>) target(%19 : memref<128xf32, #tpu.memory_space<vmem>>) target_semaphore(%21 : memref<!tpu.dma_semaphore, #tpu.memory_space<semaphore_mem>>)
    %c0_i32_11 = arith.constant 0 : i32
    %c2_i32 = arith.constant 2 : i32
    %c0_i32_12 = arith.constant 0 : i32
    %c0_i32_13 = arith.constant 0 : i32
    %22 = tpu.memref_slice %arg4[%9, %c0_i32_13] : memref<16x128xf32, #tpu.memory_space<any>> -> memref<1x128xf32, #tpu.memory_space<any>>
    %23 = tpu.memref_squeeze %22 : memref<1x128xf32, #tpu.memory_space<any>> -> memref<128xf32, #tpu.memory_space<any>>
    %c0_i32_14 = arith.constant 0 : i32
    %24 = tpu.memref_slice %arg11[%c0_i32_11, %c0_i32_14] : memref<8x128xf32, #tpu.memory_space<vmem>> -> memref<1x128xf32, #tpu.memory_space<vmem>>
    %25 = tpu.memref_squeeze %24 : memref<1x128xf32, #tpu.memory_space<vmem>> -> memref<128xf32, #tpu.memory_space<vmem>>
    %26 = tpu.memref_slice %arg12[%c2_i32, %c0_i32_12] : memref<3x8x!tpu.dma_semaphore, #tpu.memory_space<semaphore_mem>> -> memref<1x1x!tpu.dma_semaphore, #tpu.memory_space<semaphore_mem>>
    %27 = tpu.memref_squeeze %26 : memref<1x1x!tpu.dma_semaphore, #tpu.memory_space<semaphore_mem>> -> memref<!tpu.dma_semaphore, #tpu.memory_space<semaphore_mem>>
    tpu.enqueue_dma source(%23 : memref<128xf32, #tpu.memory_space<any>>) target(%25 : memref<128xf32, #tpu.memory_space<vmem>>) target_semaphore(%27 : memref<!tpu.dma_semaphore, #tpu.memory_space<semaphore_mem>>)
    %c1_i32_15 = arith.constant 1 : i32
    %28 = arith.addi %0, %c1_i32_15 : i32
    %29 = arith.index_cast %28 : i32 to index
    %30 = memref.load %arg1[%29] : memref<8xi32, #tpu.memory_space<smem>>
    %c1_i32_16 = arith.constant 1 : i32
    %31 = arith.addi %0, %c1_i32_16 : i32
    %32 = arith.index_cast %31 : i32 to index
    %33 = memref.load %arg2[%32] : memref<8xi32, #tpu.memory_space<smem>>
    %c1_i32_17 = arith.constant 1 : i32
    %34 = arith.addi %0, %c1_i32_17 : i32
    %35 = arith.index_cast %34 : i32 to index
    %36 = memref.load %arg3[%35] : memref<8xi32, #tpu.memory_space<smem>>
    %c1_i32_18 = arith.constant 1 : i32
    %c0_i32_19 = arith.constant 0 : i32
    %c1_i32_20 = arith.constant 1 : i32
    %c0_i32_21 = arith.constant 0 : i32
    %37 = tpu.memref_slice %arg4[%30, %c0_i32_21] : memref<16x128xf32, #tpu.memory_space<any>> -> memref<1x128xf32, #tpu.memory_space<any>>
    %38 = tpu.memref_squeeze %37 : memref<1x128xf32, #tpu.memory_space<any>> -> memref<128xf32, #tpu.memory_space<any>>
    %c0_i32_22 = arith.constant 0 : i32
    %39 = tpu.memref_slice %arg9[%c1_i32_18, %c0_i32_22] : memref<8x128xf32, #tpu.memory_space<vmem>> -> memref<1x128xf32, #tpu.memory_space<vmem>>
    %40 = tpu.memref_squeeze %39 : memref<1x128xf32, #tpu.memory_space<vmem>> -> memref<128xf32, #tpu.memory_space<vmem>>
    %41 = tpu.memref_slice %arg12[%c0_i32_19, %c1_i32_20] : memref<3x8x!tpu.dma_semaphore, #tpu.memory_space<semaphore_mem>> -> memref<1x1x!tpu.dma_semaphore, #tpu.memory_space<semaphore_mem>>
    %42 = tpu.memref_squeeze %41 : memref<1x1x!tpu.dma_semaphore, #tpu.memory_space<semaphore_mem>> -> memref<!tpu.dma_semaphore, #tpu.memory_space<semaphore_mem>>
    tpu.enqueue_dma source(%38 : memref<128xf32, #tpu.memory_space<any>>) target(%40 : memref<128xf32, #tpu.memory_space<vmem>>) target_semaphore(%42 : memref<!tpu.dma_semaphore, #tpu.memory_space<semaphore_mem>>)
    %c1_i32_23 = arith.constant 1 : i32
    %c1_i32_24 = arith.constant 1 : i32
    %c1_i32_25 = arith.constant 1 : i32
    %c0_i32_26 = arith.constant 0 : i32
    %43 = tpu.memref_slice %arg5[%33, %c0_i32_26] : memref<4x128xf32, #tpu.memory_space<any>> -> memref<1x128xf32, #tpu.memory_space<any>>
    %44 = tpu.memref_squeeze %43 : memref<1x128xf32, #tpu.memory_space<any>> -> memref<128xf32, #tpu.memory_space<any>>
    %c0_i32_27 = arith.constant 0 : i32
    %45 = tpu.memref_slice %arg10[%c1_i32_23, %c0_i32_27] : memref<8x128xf32, #tpu.memory_space<vmem>> -> memref<1x128xf32, #tpu.memory_space<vmem>>
    %46 = tpu.memref_squeeze %45 : memref<1x128xf32, #tpu.memory_space<vmem>> -> memref<128xf32, #tpu.memory_space<vmem>>
    %47 = tpu.memref_slice %arg12[%c1_i32_24, %c1_i32_25] : memref<3x8x!tpu.dma_semaphore, #tpu.memory_space<semaphore_mem>> -> memref<1x1x!tpu.dma_semaphore, #tpu.memory_space<semaphore_mem>>
    %48 = tpu.memref_squeeze %47 : memref<1x1x!tpu.dma_semaphore, #tpu.memory_space<semaphore_mem>> -> memref<!tpu.dma_semaphore, #tpu.memory_space<semaphore_mem>>
    tpu.enqueue_dma source(%44 : memref<128xf32, #tpu.memory_space<any>>) target(%46 : memref<128xf32, #tpu.memory_space<vmem>>) target_semaphore(%48 : memref<!tpu.dma_semaphore, #tpu.memory_space<semaphore_mem>>)
    %c1_i32_28 = arith.constant 1 : i32
    %c2_i32_29 = arith.constant 2 : i32
    %c1_i32_30 = arith.constant 1 : i32
    %c0_i32_31 = arith.constant 0 : i32
    %49 = tpu.memref_slice %arg4[%36, %c0_i32_31] : memref<16x128xf32, #tpu.memory_space<any>> -> memref<1x128xf32, #tpu.memory_space<any>>
    %50 = tpu.memref_squeeze %49 : memref<1x128xf32, #tpu.memory_space<any>> -> memref<128xf32, #tpu.memory_space<any>>
    %c0_i32_32 = arith.constant 0 : i32
    %51 = tpu.memref_slice %arg11[%c1_i32_28, %c0_i32_32] : memref<8x128xf32, #tpu.memory_space<vmem>> -> memref<1x128xf32, #tpu.memory_space<vmem>>
    %52 = tpu.memref_squeeze %51 : memref<1x128xf32, #tpu.memory_space<vmem>> -> memref<128xf32, #tpu.memory_space<vmem>>
    %53 = tpu.memref_slice %arg12[%c2_i32_29, %c1_i32_30] : memref<3x8x!tpu.dma_semaphore, #tpu.memory_space<semaphore_mem>> -> memref<1x1x!tpu.dma_semaphore, #tpu.memory_space<semaphore_mem>>
    %54 = tpu.memref_squeeze %53 : memref<1x1x!tpu.dma_semaphore, #tpu.memory_space<semaphore_mem>> -> memref<!tpu.dma_semaphore, #tpu.memory_space<semaphore_mem>>
    tpu.enqueue_dma source(%50 : memref<128xf32, #tpu.memory_space<any>>) target(%52 : memref<128xf32, #tpu.memory_space<vmem>>) target_semaphore(%54 : memref<!tpu.dma_semaphore, #tpu.memory_space<semaphore_mem>>)
    %c2_i32_33 = arith.constant 2 : i32
    %55 = arith.addi %0, %c2_i32_33 : i32
    %56 = arith.index_cast %55 : i32 to index
    %57 = memref.load %arg1[%56] : memref<8xi32, #tpu.memory_space<smem>>
    %c2_i32_34 = arith.constant 2 : i32
    %58 = arith.addi %0, %c2_i32_34 : i32
    %59 = arith.index_cast %58 : i32 to index
    %60 = memref.load %arg2[%59] : memref<8xi32, #tpu.memory_space<smem>>
    %c2_i32_35 = arith.constant 2 : i32
    %61 = arith.addi %0, %c2_i32_35 : i32
    %62 = arith.index_cast %61 : i32 to index
    %63 = memref.load %arg3[%62] : memref<8xi32, #tpu.memory_space<smem>>
    %c2_i32_36 = arith.constant 2 : i32
    %c0_i32_37 = arith.constant 0 : i32
    %c2_i32_38 = arith.constant 2 : i32
    %c0_i32_39 = arith.constant 0 : i32
    %64 = tpu.memref_slice %arg4[%57, %c0_i32_39] : memref<16x128xf32, #tpu.memory_space<any>> -> memref<1x128xf32, #tpu.memory_space<any>>
    %65 = tpu.memref_squeeze %64 : memref<1x128xf32, #tpu.memory_space<any>> -> memref<128xf32, #tpu.memory_space<any>>
    %c0_i32_40 = arith.constant 0 : i32
    %66 = tpu.memref_slice %arg9[%c2_i32_36, %c0_i32_40] : memref<8x128xf32, #tpu.memory_space<vmem>> -> memref<1x128xf32, #tpu.memory_space<vmem>>
    %67 = tpu.memref_squeeze %66 : memref<1x128xf32, #tpu.memory_space<vmem>> -> memref<128xf32, #tpu.memory_space<vmem>>
    %68 = tpu.memref_slice %arg12[%c0_i32_37, %c2_i32_38] : memref<3x8x!tpu.dma_semaphore, #tpu.memory_space<semaphore_mem>> -> memref<1x1x!tpu.dma_semaphore, #tpu.memory_space<semaphore_mem>>
    %69 = tpu.memref_squeeze %68 : memref<1x1x!tpu.dma_semaphore, #tpu.memory_space<semaphore_mem>> -> memref<!tpu.dma_semaphore, #tpu.memory_space<semaphore_mem>>
    tpu.enqueue_dma source(%65 : memref<128xf32, #tpu.memory_space<any>>) target(%67 : memref<128xf32, #tpu.memory_space<vmem>>) target_semaphore(%69 : memref<!tpu.dma_semaphore, #tpu.memory_space<semaphore_mem>>)
    %c2_i32_41 = arith.constant 2 : i32
    %c1_i32_42 = arith.constant 1 : i32
    %c2_i32_43 = arith.constant 2 : i32
    %c0_i32_44 = arith.constant 0 : i32
    %70 = tpu.memref_slice %arg5[%60, %c0_i32_44] : memref<4x128xf32, #tpu.memory_space<any>> -> memref<1x128xf32, #tpu.memory_space<any>>
    %71 = tpu.memref_squeeze %70 : memref<1x128xf32, #tpu.memory_space<any>> -> memref<128xf32, #tpu.memory_space<any>>
    %c0_i32_45 = arith.constant 0 : i32
    %72 = tpu.memref_slice %arg10[%c2_i32_41, %c0_i32_45] : memref<8x128xf32, #tpu.memory_space<vmem>> -> memref<1x128xf32, #tpu.memory_space<vmem>>
    %73 = tpu.memref_squeeze %72 : memref<1x128xf32, #tpu.memory_space<vmem>> -> memref<128xf32, #tpu.memory_space<vmem>>
    %74 = tpu.memref_slice %arg12[%c1_i32_42, %c2_i32_43] : memref<3x8x!tpu.dma_semaphore, #tpu.memory_space<semaphore_mem>> -> memref<1x1x!tpu.dma_semaphore, #tpu.memory_space<semaphore_mem>>
    %75 = tpu.memref_squeeze %74 : memref<1x1x!tpu.dma_semaphore, #tpu.memory_space<semaphore_mem>> -> memref<!tpu.dma_semaphore, #tpu.memory_space<semaphore_mem>>
    tpu.enqueue_dma source(%71 : memref<128xf32, #tpu.memory_space<any>>) target(%73 : memref<128xf32, #tpu.memory_space<vmem>>) target_semaphore(%75 : memref<!tpu.dma_semaphore, #tpu.memory_space<semaphore_mem>>)
    %c2_i32_46 = arith.constant 2 : i32
    %c2_i32_47 = arith.constant 2 : i32
    %c2_i32_48 = arith.constant 2 : i32
    %c0_i32_49 = arith.constant 0 : i32
    %76 = tpu.memref_slice %arg4[%63, %c0_i32_49] : memref<16x128xf32, #tpu.memory_space<any>> -> memref<1x128xf32, #tpu.memory_space<any>>
    %77 = tpu.memref_squeeze %76 : memref<1x128xf32, #tpu.memory_space<any>> -> memref<128xf32, #tpu.memory_space<any>>
    %c0_i32_50 = arith.constant 0 : i32
    %78 = tpu.memref_slice %arg11[%c2_i32_46, %c0_i32_50] : memref<8x128xf32, #tpu.memory_space<vmem>> -> memref<1x128xf32, #tpu.memory_space<vmem>>
    %79 = tpu.memref_squeeze %78 : memref<1x128xf32, #tpu.memory_space<vmem>> -> memref<128xf32, #tpu.memory_space<vmem>>
    %80 = tpu.memref_slice %arg12[%c2_i32_47, %c2_i32_48] : memref<3x8x!tpu.dma_semaphore, #tpu.memory_space<semaphore_mem>> -> memref<1x1x!tpu.dma_semaphore, #tpu.memory_space<semaphore_mem>>
    %81 = tpu.memref_squeeze %80 : memref<1x1x!tpu.dma_semaphore, #tpu.memory_space<semaphore_mem>> -> memref<!tpu.dma_semaphore, #tpu.memory_space<semaphore_mem>>
    tpu.enqueue_dma source(%77 : memref<128xf32, #tpu.memory_space<any>>) target(%79 : memref<128xf32, #tpu.memory_space<vmem>>) target_semaphore(%81 : memref<!tpu.dma_semaphore, #tpu.memory_space<semaphore_mem>>)
    %c3_i32 = arith.constant 3 : i32
    %82 = arith.addi %0, %c3_i32 : i32
    %83 = arith.index_cast %82 : i32 to index
    %84 = memref.load %arg1[%83] : memref<8xi32, #tpu.memory_space<smem>>
    %c3_i32_51 = arith.constant 3 : i32
    %85 = arith.addi %0, %c3_i32_51 : i32
    %86 = arith.index_cast %85 : i32 to index
    %87 = memref.load %arg2[%86] : memref<8xi32, #tpu.memory_space<smem>>
    %c3_i32_52 = arith.constant 3 : i32
    %88 = arith.addi %0, %c3_i32_52 : i32
    %89 = arith.index_cast %88 : i32 to index
    %90 = memref.load %arg3[%89] : memref<8xi32, #tpu.memory_space<smem>>
    %c3_i32_53 = arith.constant 3 : i32
    %c0_i32_54 = arith.constant 0 : i32
    %c3_i32_55 = arith.constant 3 : i32
    %c0_i32_56 = arith.constant 0 : i32
    %91 = tpu.memref_slice %arg4[%84, %c0_i32_56] : memref<16x128xf32, #tpu.memory_space<any>> -> memref<1x128xf32, #tpu.memory_space<any>>
    %92 = tpu.memref_squeeze %91 : memref<1x128xf32, #tpu.memory_space<any>> -> memref<128xf32, #tpu.memory_space<any>>
    %c0_i32_57 = arith.constant 0 : i32
    %93 = tpu.memref_slice %arg9[%c3_i32_53, %c0_i32_57] : memref<8x128xf32, #tpu.memory_space<vmem>> -> memref<1x128xf32, #tpu.memory_space<vmem>>
    %94 = tpu.memref_squeeze %93 : memref<1x128xf32, #tpu.memory_space<vmem>> -> memref<128xf32, #tpu.memory_space<vmem>>
    %95 = tpu.memref_slice %arg12[%c0_i32_54, %c3_i32_55] : memref<3x8x!tpu.dma_semaphore, #tpu.memory_space<semaphore_mem>> -> memref<1x1x!tpu.dma_semaphore, #tpu.memory_space<semaphore_mem>>
    %96 = tpu.memref_squeeze %95 : memref<1x1x!tpu.dma_semaphore, #tpu.memory_space<semaphore_mem>> -> memref<!tpu.dma_semaphore, #tpu.memory_space<semaphore_mem>>
    tpu.enqueue_dma source(%92 : memref<128xf32, #tpu.memory_space<any>>) target(%94 : memref<128xf32, #tpu.memory_space<vmem>>) target_semaphore(%96 : memref<!tpu.dma_semaphore, #tpu.memory_space<semaphore_mem>>)
    %c3_i32_58 = arith.constant 3 : i32
    %c1_i32_59 = arith.constant 1 : i32
    %c3_i32_60 = arith.constant 3 : i32
    %c0_i32_61 = arith.constant 0 : i32
    %97 = tpu.memref_slice %arg5[%87, %c0_i32_61] : memref<4x128xf32, #tpu.memory_space<any>> -> memref<1x128xf32, #tpu.memory_space<any>>
    %98 = tpu.memref_squeeze %97 : memref<1x128xf32, #tpu.memory_space<any>> -> memref<128xf32, #tpu.memory_space<any>>
    %c0_i32_62 = arith.constant 0 : i32
    %99 = tpu.memref_slice %arg10[%c3_i32_58, %c0_i32_62] : memref<8x128xf32, #tpu.memory_space<vmem>> -> memref<1x128xf32, #tpu.memory_space<vmem>>
    %100 = tpu.memref_squeeze %99 : memref<1x128xf32, #tpu.memory_space<vmem>> -> memref<128xf32, #tpu.memory_space<vmem>>
    %101 = tpu.memref_slice %arg12[%c1_i32_59, %c3_i32_60] : memref<3x8x!tpu.dma_semaphore, #tpu.memory_space<semaphore_mem>> -> memref<1x1x!tpu.dma_semaphore, #tpu.memory_space<semaphore_mem>>
    %102 = tpu.memref_squeeze %101 : memref<1x1x!tpu.dma_semaphore, #tpu.memory_space<semaphore_mem>> -> memref<!tpu.dma_semaphore, #tpu.memory_space<semaphore_mem>>
    tpu.enqueue_dma source(%98 : memref<128xf32, #tpu.memory_space<any>>) target(%100 : memref<128xf32, #tpu.memory_space<vmem>>) target_semaphore(%102 : memref<!tpu.dma_semaphore, #tpu.memory_space<semaphore_mem>>)
    %c3_i32_63 = arith.constant 3 : i32
    %c2_i32_64 = arith.constant 2 : i32
    %c3_i32_65 = arith.constant 3 : i32
    %c0_i32_66 = arith.constant 0 : i32
    %103 = tpu.memref_slice %arg4[%90, %c0_i32_66] : memref<16x128xf32, #tpu.memory_space<any>> -> memref<1x128xf32, #tpu.memory_space<any>>
    %104 = tpu.memref_squeeze %103 : memref<1x128xf32, #tpu.memory_space<any>> -> memref<128xf32, #tpu.memory_space<any>>
    %c0_i32_67 = arith.constant 0 : i32
    %105 = tpu.memref_slice %arg11[%c3_i32_63, %c0_i32_67] : memref<8x128xf32, #tpu.memory_space<vmem>> -> memref<1x128xf32, #tpu.memory_space<vmem>>
    %106 = tpu.memref_squeeze %105 : memref<1x128xf32, #tpu.memory_space<vmem>> -> memref<128xf32, #tpu.memory_space<vmem>>
    %107 = tpu.memref_slice %arg12[%c2_i32_64, %c3_i32_65] : memref<3x8x!tpu.dma_semaphore, #tpu.memory_space<semaphore_mem>> -> memref<1x1x!tpu.dma_semaphore, #tpu.memory_space<semaphore_mem>>
    %108 = tpu.memref_squeeze %107 : memref<1x1x!tpu.dma_semaphore, #tpu.memory_space<semaphore_mem>> -> memref<!tpu.dma_semaphore, #tpu.memory_space<semaphore_mem>>
    tpu.enqueue_dma source(%104 : memref<128xf32, #tpu.memory_space<any>>) target(%106 : memref<128xf32, #tpu.memory_space<vmem>>) target_semaphore(%108 : memref<!tpu.dma_semaphore, #tpu.memory_space<semaphore_mem>>)
    %c4_i32 = arith.constant 4 : i32
    %109 = arith.addi %0, %c4_i32 : i32
    %110 = arith.index_cast %109 : i32 to index
    %111 = memref.load %arg1[%110] : memref<8xi32, #tpu.memory_space<smem>>
    %c4_i32_68 = arith.constant 4 : i32
    %112 = arith.addi %0, %c4_i32_68 : i32
    %113 = arith.index_cast %112 : i32 to index
    %114 = memref.load %arg2[%113] : memref<8xi32, #tpu.memory_space<smem>>
    %c4_i32_69 = arith.constant 4 : i32
    %115 = arith.addi %0, %c4_i32_69 : i32
    %116 = arith.index_cast %115 : i32 to index
    %117 = memref.load %arg3[%116] : memref<8xi32, #tpu.memory_space<smem>>
    %c4_i32_70 = arith.constant 4 : i32
    %c0_i32_71 = arith.constant 0 : i32
    %c4_i32_72 = arith.constant 4 : i32
    %c0_i32_73 = arith.constant 0 : i32
    %118 = tpu.memref_slice %arg4[%111, %c0_i32_73] : memref<16x128xf32, #tpu.memory_space<any>> -> memref<1x128xf32, #tpu.memory_space<any>>
    %119 = tpu.memref_squeeze %118 : memref<1x128xf32, #tpu.memory_space<any>> -> memref<128xf32, #tpu.memory_space<any>>
    %c0_i32_74 = arith.constant 0 : i32
    %120 = tpu.memref_slice %arg9[%c4_i32_70, %c0_i32_74] : memref<8x128xf32, #tpu.memory_space<vmem>> -> memref<1x128xf32, #tpu.memory_space<vmem>>
    %121 = tpu.memref_squeeze %120 : memref<1x128xf32, #tpu.memory_space<vmem>> -> memref<128xf32, #tpu.memory_space<vmem>>
    %122 = tpu.memref_slice %arg12[%c0_i32_71, %c4_i32_72] : memref<3x8x!tpu.dma_semaphore, #tpu.memory_space<semaphore_mem>> -> memref<1x1x!tpu.dma_semaphore, #tpu.memory_space<semaphore_mem>>
    %123 = tpu.memref_squeeze %122 : memref<1x1x!tpu.dma_semaphore, #tpu.memory_space<semaphore_mem>> -> memref<!tpu.dma_semaphore, #tpu.memory_space<semaphore_mem>>
    tpu.enqueue_dma source(%119 : memref<128xf32, #tpu.memory_space<any>>) target(%121 : memref<128xf32, #tpu.memory_space<vmem>>) target_semaphore(%123 : memref<!tpu.dma_semaphore, #tpu.memory_space<semaphore_mem>>)
    %c4_i32_75 = arith.constant 4 : i32
    %c1_i32_76 = arith.constant 1 : i32
    %c4_i32_77 = arith.constant 4 : i32
    %c0_i32_78 = arith.constant 0 : i32
    %124 = tpu.memref_slice %arg5[%114, %c0_i32_78] : memref<4x128xf32, #tpu.memory_space<any>> -> memref<1x128xf32, #tpu.memory_space<any>>
    %125 = tpu.memref_squeeze %124 : memref<1x128xf32, #tpu.memory_space<any>> -> memref<128xf32, #tpu.memory_space<any>>
    %c0_i32_79 = arith.constant 0 : i32
    %126 = tpu.memref_slice %arg10[%c4_i32_75, %c0_i32_79] : memref<8x128xf32, #tpu.memory_space<vmem>> -> memref<1x128xf32, #tpu.memory_space<vmem>>
    %127 = tpu.memref_squeeze %126 : memref<1x128xf32, #tpu.memory_space<vmem>> -> memref<128xf32, #tpu.memory_space<vmem>>
    %128 = tpu.memref_slice %arg12[%c1_i32_76, %c4_i32_77] : memref<3x8x!tpu.dma_semaphore, #tpu.memory_space<semaphore_mem>> -> memref<1x1x!tpu.dma_semaphore, #tpu.memory_space<semaphore_mem>>
    %129 = tpu.memref_squeeze %128 : memref<1x1x!tpu.dma_semaphore, #tpu.memory_space<semaphore_mem>> -> memref<!tpu.dma_semaphore, #tpu.memory_space<semaphore_mem>>
    tpu.enqueue_dma source(%125 : memref<128xf32, #tpu.memory_space<any>>) target(%127 : memref<128xf32, #tpu.memory_space<vmem>>) target_semaphore(%129 : memref<!tpu.dma_semaphore, #tpu.memory_space<semaphore_mem>>)
    %c4_i32_80 = arith.constant 4 : i32
    %c2_i32_81 = arith.constant 2 : i32
    %c4_i32_82 = arith.constant 4 : i32
    %c0_i32_83 = arith.constant 0 : i32
    %130 = tpu.memref_slice %arg4[%117, %c0_i32_83] : memref<16x128xf32, #tpu.memory_space<any>> -> memref<1x128xf32, #tpu.memory_space<any>>
    %131 = tpu.memref_squeeze %130 : memref<1x128xf32, #tpu.memory_space<any>> -> memref<128xf32, #tpu.memory_space<any>>
    %c0_i32_84 = arith.constant 0 : i32
    %132 = tpu.memref_slice %arg11[%c4_i32_80, %c0_i32_84] : memref<8x128xf32, #tpu.memory_space<vmem>> -> memref<1x128xf32, #tpu.memory_space<vmem>>
    %133 = tpu.memref_squeeze %132 : memref<1x128xf32, #tpu.memory_space<vmem>> -> memref<128xf32, #tpu.memory_space<vmem>>
    %134 = tpu.memref_slice %arg12[%c2_i32_81, %c4_i32_82] : memref<3x8x!tpu.dma_semaphore, #tpu.memory_space<semaphore_mem>> -> memref<1x1x!tpu.dma_semaphore, #tpu.memory_space<semaphore_mem>>
    %135 = tpu.memref_squeeze %134 : memref<1x1x!tpu.dma_semaphore, #tpu.memory_space<semaphore_mem>> -> memref<!tpu.dma_semaphore, #tpu.memory_space<semaphore_mem>>
    tpu.enqueue_dma source(%131 : memref<128xf32, #tpu.memory_space<any>>) target(%133 : memref<128xf32, #tpu.memory_space<vmem>>) target_semaphore(%135 : memref<!tpu.dma_semaphore, #tpu.memory_space<semaphore_mem>>)
    %c5_i32 = arith.constant 5 : i32
    %136 = arith.addi %0, %c5_i32 : i32
    %137 = arith.index_cast %136 : i32 to index
    %138 = memref.load %arg1[%137] : memref<8xi32, #tpu.memory_space<smem>>
    %c5_i32_85 = arith.constant 5 : i32
    %139 = arith.addi %0, %c5_i32_85 : i32
    %140 = arith.index_cast %139 : i32 to index
    %141 = memref.load %arg2[%140] : memref<8xi32, #tpu.memory_space<smem>>
    %c5_i32_86 = arith.constant 5 : i32
    %142 = arith.addi %0, %c5_i32_86 : i32
    %143 = arith.index_cast %142 : i32 to index
    %144 = memref.load %arg3[%143] : memref<8xi32, #tpu.memory_space<smem>>
    %c5_i32_87 = arith.constant 5 : i32
    %c0_i32_88 = arith.constant 0 : i32
    %c5_i32_89 = arith.constant 5 : i32
    %c0_i32_90 = arith.constant 0 : i32
    %145 = tpu.memref_slice %arg4[%138, %c0_i32_90] : memref<16x128xf32, #tpu.memory_space<any>> -> memref<1x128xf32, #tpu.memory_space<any>>
    %146 = tpu.memref_squeeze %145 : memref<1x128xf32, #tpu.memory_space<any>> -> memref<128xf32, #tpu.memory_space<any>>
    %c0_i32_91 = arith.constant 0 : i32
    %147 = tpu.memref_slice %arg9[%c5_i32_87, %c0_i32_91] : memref<8x128xf32, #tpu.memory_space<vmem>> -> memref<1x128xf32, #tpu.memory_space<vmem>>
    %148 = tpu.memref_squeeze %147 : memref<1x128xf32, #tpu.memory_space<vmem>> -> memref<128xf32, #tpu.memory_space<vmem>>
    %149 = tpu.memref_slice %arg12[%c0_i32_88, %c5_i32_89] : memref<3x8x!tpu.dma_semaphore, #tpu.memory_space<semaphore_mem>> -> memref<1x1x!tpu.dma_semaphore, #tpu.memory_space<semaphore_mem>>
    %150 = tpu.memref_squeeze %149 : memref<1x1x!tpu.dma_semaphore, #tpu.memory_space<semaphore_mem>> -> memref<!tpu.dma_semaphore, #tpu.memory_space<semaphore_mem>>
    tpu.enqueue_dma source(%146 : memref<128xf32, #tpu.memory_space<any>>) target(%148 : memref<128xf32, #tpu.memory_space<vmem>>) target_semaphore(%150 : memref<!tpu.dma_semaphore, #tpu.memory_space<semaphore_mem>>)
    %c5_i32_92 = arith.constant 5 : i32
    %c1_i32_93 = arith.constant 1 : i32
    %c5_i32_94 = arith.constant 5 : i32
    %c0_i32_95 = arith.constant 0 : i32
    %151 = tpu.memref_slice %arg5[%141, %c0_i32_95] : memref<4x128xf32, #tpu.memory_space<any>> -> memref<1x128xf32, #tpu.memory_space<any>>
    %152 = tpu.memref_squeeze %151 : memref<1x128xf32, #tpu.memory_space<any>> -> memref<128xf32, #tpu.memory_space<any>>
    %c0_i32_96 = arith.constant 0 : i32
    %153 = tpu.memref_slice %arg10[%c5_i32_92, %c0_i32_96] : memref<8x128xf32, #tpu.memory_space<vmem>> -> memref<1x128xf32, #tpu.memory_space<vmem>>
    %154 = tpu.memref_squeeze %153 : memref<1x128xf32, #tpu.memory_space<vmem>> -> memref<128xf32, #tpu.memory_space<vmem>>
    %155 = tpu.memref_slice %arg12[%c1_i32_93, %c5_i32_94] : memref<3x8x!tpu.dma_semaphore, #tpu.memory_space<semaphore_mem>> -> memref<1x1x!tpu.dma_semaphore, #tpu.memory_space<semaphore_mem>>
    %156 = tpu.memref_squeeze %155 : memref<1x1x!tpu.dma_semaphore, #tpu.memory_space<semaphore_mem>> -> memref<!tpu.dma_semaphore, #tpu.memory_space<semaphore_mem>>
    tpu.enqueue_dma source(%152 : memref<128xf32, #tpu.memory_space<any>>) target(%154 : memref<128xf32, #tpu.memory_space<vmem>>) target_semaphore(%156 : memref<!tpu.dma_semaphore, #tpu.memory_space<semaphore_mem>>)
    %c5_i32_97 = arith.constant 5 : i32
    %c2_i32_98 = arith.constant 2 : i32
    %c5_i32_99 = arith.constant 5 : i32
    %c0_i32_100 = arith.constant 0 : i32
    %157 = tpu.memref_slice %arg4[%144, %c0_i32_100] : memref<16x128xf32, #tpu.memory_space<any>> -> memref<1x128xf32, #tpu.memory_space<any>>
    %158 = tpu.memref_squeeze %157 : memref<1x128xf32, #tpu.memory_space<any>> -> memref<128xf32, #tpu.memory_space<any>>
    %c0_i32_101 = arith.constant 0 : i32
    %159 = tpu.memref_slice %arg11[%c5_i32_97, %c0_i32_101] : memref<8x128xf32, #tpu.memory_space<vmem>> -> memref<1x128xf32, #tpu.memory_space<vmem>>
    %160 = tpu.memref_squeeze %159 : memref<1x128xf32, #tpu.memory_space<vmem>> -> memref<128xf32, #tpu.memory_space<vmem>>
    %161 = tpu.memref_slice %arg12[%c2_i32_98, %c5_i32_99] : memref<3x8x!tpu.dma_semaphore, #tpu.memory_space<semaphore_mem>> -> memref<1x1x!tpu.dma_semaphore, #tpu.memory_space<semaphore_mem>>
    %162 = tpu.memref_squeeze %161 : memref<1x1x!tpu.dma_semaphore, #tpu.memory_space<semaphore_mem>> -> memref<!tpu.dma_semaphore, #tpu.memory_space<semaphore_mem>>
    tpu.enqueue_dma source(%158 : memref<128xf32, #tpu.memory_space<any>>) target(%160 : memref<128xf32, #tpu.memory_space<vmem>>) target_semaphore(%162 : memref<!tpu.dma_semaphore, #tpu.memory_space<semaphore_mem>>)
    %c6_i32 = arith.constant 6 : i32
    %163 = arith.addi %0, %c6_i32 : i32
    %164 = arith.index_cast %163 : i32 to index
    %165 = memref.load %arg1[%164] : memref<8xi32, #tpu.memory_space<smem>>
    %c6_i32_102 = arith.constant 6 : i32
    %166 = arith.addi %0, %c6_i32_102 : i32
    %167 = arith.index_cast %166 : i32 to index
    %168 = memref.load %arg2[%167] : memref<8xi32, #tpu.memory_space<smem>>
    %c6_i32_103 = arith.constant 6 : i32
    %169 = arith.addi %0, %c6_i32_103 : i32
    %170 = arith.index_cast %169 : i32 to index
    %171 = memref.load %arg3[%170] : memref<8xi32, #tpu.memory_space<smem>>
    %c6_i32_104 = arith.constant 6 : i32
    %c0_i32_105 = arith.constant 0 : i32
    %c6_i32_106 = arith.constant 6 : i32
    %c0_i32_107 = arith.constant 0 : i32
    %172 = tpu.memref_slice %arg4[%165, %c0_i32_107] : memref<16x128xf32, #tpu.memory_space<any>> -> memref<1x128xf32, #tpu.memory_space<any>>
    %173 = tpu.memref_squeeze %172 : memref<1x128xf32, #tpu.memory_space<any>> -> memref<128xf32, #tpu.memory_space<any>>
    %c0_i32_108 = arith.constant 0 : i32
    %174 = tpu.memref_slice %arg9[%c6_i32_104, %c0_i32_108] : memref<8x128xf32, #tpu.memory_space<vmem>> -> memref<1x128xf32, #tpu.memory_space<vmem>>
    %175 = tpu.memref_squeeze %174 : memref<1x128xf32, #tpu.memory_space<vmem>> -> memref<128xf32, #tpu.memory_space<vmem>>
    %176 = tpu.memref_slice %arg12[%c0_i32_105, %c6_i32_106] : memref<3x8x!tpu.dma_semaphore, #tpu.memory_space<semaphore_mem>> -> memref<1x1x!tpu.dma_semaphore, #tpu.memory_space<semaphore_mem>>
    %177 = tpu.memref_squeeze %176 : memref<1x1x!tpu.dma_semaphore, #tpu.memory_space<semaphore_mem>> -> memref<!tpu.dma_semaphore, #tpu.memory_space<semaphore_mem>>
    tpu.enqueue_dma source(%173 : memref<128xf32, #tpu.memory_space<any>>) target(%175 : memref<128xf32, #tpu.memory_space<vmem>>) target_semaphore(%177 : memref<!tpu.dma_semaphore, #tpu.memory_space<semaphore_mem>>)
    %c6_i32_109 = arith.constant 6 : i32
    %c1_i32_110 = arith.constant 1 : i32
    %c6_i32_111 = arith.constant 6 : i32
    %c0_i32_112 = arith.constant 0 : i32
    %178 = tpu.memref_slice %arg5[%168, %c0_i32_112] : memref<4x128xf32, #tpu.memory_space<any>> -> memref<1x128xf32, #tpu.memory_space<any>>
    %179 = tpu.memref_squeeze %178 : memref<1x128xf32, #tpu.memory_space<any>> -> memref<128xf32, #tpu.memory_space<any>>
    %c0_i32_113 = arith.constant 0 : i32
    %180 = tpu.memref_slice %arg10[%c6_i32_109, %c0_i32_113] : memref<8x128xf32, #tpu.memory_space<vmem>> -> memref<1x128xf32, #tpu.memory_space<vmem>>
    %181 = tpu.memref_squeeze %180 : memref<1x128xf32, #tpu.memory_space<vmem>> -> memref<128xf32, #tpu.memory_space<vmem>>
    %182 = tpu.memref_slice %arg12[%c1_i32_110, %c6_i32_111] : memref<3x8x!tpu.dma_semaphore, #tpu.memory_space<semaphore_mem>> -> memref<1x1x!tpu.dma_semaphore, #tpu.memory_space<semaphore_mem>>
    %183 = tpu.memref_squeeze %182 : memref<1x1x!tpu.dma_semaphore, #tpu.memory_space<semaphore_mem>> -> memref<!tpu.dma_semaphore, #tpu.memory_space<semaphore_mem>>
    tpu.enqueue_dma source(%179 : memref<128xf32, #tpu.memory_space<any>>) target(%181 : memref<128xf32, #tpu.memory_space<vmem>>) target_semaphore(%183 : memref<!tpu.dma_semaphore, #tpu.memory_space<semaphore_mem>>)
    %c6_i32_114 = arith.constant 6 : i32
    %c2_i32_115 = arith.constant 2 : i32
    %c6_i32_116 = arith.constant 6 : i32
    %c0_i32_117 = arith.constant 0 : i32
    %184 = tpu.memref_slice %arg4[%171, %c0_i32_117] : memref<16x128xf32, #tpu.memory_space<any>> -> memref<1x128xf32, #tpu.memory_space<any>>
    %185 = tpu.memref_squeeze %184 : memref<1x128xf32, #tpu.memory_space<any>> -> memref<128xf32, #tpu.memory_space<any>>
    %c0_i32_118 = arith.constant 0 : i32
    %186 = tpu.memref_slice %arg11[%c6_i32_114, %c0_i32_118] : memref<8x128xf32, #tpu.memory_space<vmem>> -> memref<1x128xf32, #tpu.memory_space<vmem>>
    %187 = tpu.memref_squeeze %186 : memref<1x128xf32, #tpu.memory_space<vmem>> -> memref<128xf32, #tpu.memory_space<vmem>>
    %188 = tpu.memref_slice %arg12[%c2_i32_115, %c6_i32_116] : memref<3x8x!tpu.dma_semaphore, #tpu.memory_space<semaphore_mem>> -> memref<1x1x!tpu.dma_semaphore, #tpu.memory_space<semaphore_mem>>
    %189 = tpu.memref_squeeze %188 : memref<1x1x!tpu.dma_semaphore, #tpu.memory_space<semaphore_mem>> -> memref<!tpu.dma_semaphore, #tpu.memory_space<semaphore_mem>>
    tpu.enqueue_dma source(%185 : memref<128xf32, #tpu.memory_space<any>>) target(%187 : memref<128xf32, #tpu.memory_space<vmem>>) target_semaphore(%189 : memref<!tpu.dma_semaphore, #tpu.memory_space<semaphore_mem>>)
    %c7_i32 = arith.constant 7 : i32
    %190 = arith.addi %0, %c7_i32 : i32
    %191 = arith.index_cast %190 : i32 to index
    %192 = memref.load %arg1[%191] : memref<8xi32, #tpu.memory_space<smem>>
    %c7_i32_119 = arith.constant 7 : i32
    %193 = arith.addi %0, %c7_i32_119 : i32
    %194 = arith.index_cast %193 : i32 to index
    %195 = memref.load %arg2[%194] : memref<8xi32, #tpu.memory_space<smem>>
    %c7_i32_120 = arith.constant 7 : i32
    %196 = arith.addi %0, %c7_i32_120 : i32
    %197 = arith.index_cast %196 : i32 to index
    %198 = memref.load %arg3[%197] : memref<8xi32, #tpu.memory_space<smem>>
    %c7_i32_121 = arith.constant 7 : i32
    %c0_i32_122 = arith.constant 0 : i32
    %c7_i32_123 = arith.constant 7 : i32
    %c0_i32_124 = arith.constant 0 : i32
    %199 = tpu.memref_slice %arg4[%192, %c0_i32_124] : memref<16x128xf32, #tpu.memory_space<any>> -> memref<1x128xf32, #tpu.memory_space<any>>
    %200 = tpu.memref_squeeze %199 : memref<1x128xf32, #tpu.memory_space<any>> -> memref<128xf32, #tpu.memory_space<any>>
    %c0_i32_125 = arith.constant 0 : i32
    %201 = tpu.memref_slice %arg9[%c7_i32_121, %c0_i32_125] : memref<8x128xf32, #tpu.memory_space<vmem>> -> memref<1x128xf32, #tpu.memory_space<vmem>>
    %202 = tpu.memref_squeeze %201 : memref<1x128xf32, #tpu.memory_space<vmem>> -> memref<128xf32, #tpu.memory_space<vmem>>
    %203 = tpu.memref_slice %arg12[%c0_i32_122, %c7_i32_123] : memref<3x8x!tpu.dma_semaphore, #tpu.memory_space<semaphore_mem>> -> memref<1x1x!tpu.dma_semaphore, #tpu.memory_space<semaphore_mem>>
    %204 = tpu.memref_squeeze %203 : memref<1x1x!tpu.dma_semaphore, #tpu.memory_space<semaphore_mem>> -> memref<!tpu.dma_semaphore, #tpu.memory_space<semaphore_mem>>
    tpu.enqueue_dma source(%200 : memref<128xf32, #tpu.memory_space<any>>) target(%202 : memref<128xf32, #tpu.memory_space<vmem>>) target_semaphore(%204 : memref<!tpu.dma_semaphore, #tpu.memory_space<semaphore_mem>>)
    %c7_i32_126 = arith.constant 7 : i32
    %c1_i32_127 = arith.constant 1 : i32
    %c7_i32_128 = arith.constant 7 : i32
    %c0_i32_129 = arith.constant 0 : i32
    %205 = tpu.memref_slice %arg5[%195, %c0_i32_129] : memref<4x128xf32, #tpu.memory_space<any>> -> memref<1x128xf32, #tpu.memory_space<any>>
    %206 = tpu.memref_squeeze %205 : memref<1x128xf32, #tpu.memory_space<any>> -> memref<128xf32, #tpu.memory_space<any>>
    %c0_i32_130 = arith.constant 0 : i32
    %207 = tpu.memref_slice %arg10[%c7_i32_126, %c0_i32_130] : memref<8x128xf32, #tpu.memory_space<vmem>> -> memref<1x128xf32, #tpu.memory_space<vmem>>
    %208 = tpu.memref_squeeze %207 : memref<1x128xf32, #tpu.memory_space<vmem>> -> memref<128xf32, #tpu.memory_space<vmem>>
    %209 = tpu.memref_slice %arg12[%c1_i32_127, %c7_i32_128] : memref<3x8x!tpu.dma_semaphore, #tpu.memory_space<semaphore_mem>> -> memref<1x1x!tpu.dma_semaphore, #tpu.memory_space<semaphore_mem>>
    %210 = tpu.memref_squeeze %209 : memref<1x1x!tpu.dma_semaphore, #tpu.memory_space<semaphore_mem>> -> memref<!tpu.dma_semaphore, #tpu.memory_space<semaphore_mem>>
    tpu.enqueue_dma source(%206 : memref<128xf32, #tpu.memory_space<any>>) target(%208 : memref<128xf32, #tpu.memory_space<vmem>>) target_semaphore(%210 : memref<!tpu.dma_semaphore, #tpu.memory_space<semaphore_mem>>)
    %c7_i32_131 = arith.constant 7 : i32
    %c2_i32_132 = arith.constant 2 : i32
    %c7_i32_133 = arith.constant 7 : i32
    %c0_i32_134 = arith.constant 0 : i32
    %211 = tpu.memref_slice %arg4[%198, %c0_i32_134] : memref<16x128xf32, #tpu.memory_space<any>> -> memref<1x128xf32, #tpu.memory_space<any>>
    %212 = tpu.memref_squeeze %211 : memref<1x128xf32, #tpu.memory_space<any>> -> memref<128xf32, #tpu.memory_space<any>>
    %c0_i32_135 = arith.constant 0 : i32
    %213 = tpu.memref_slice %arg11[%c7_i32_131, %c0_i32_135] : memref<8x128xf32, #tpu.memory_space<vmem>> -> memref<1x128xf32, #tpu.memory_space<vmem>>
    %214 = tpu.memref_squeeze %213 : memref<1x128xf32, #tpu.memory_space<vmem>> -> memref<128xf32, #tpu.memory_space<vmem>>
    %215 = tpu.memref_slice %arg12[%c2_i32_132, %c7_i32_133] : memref<3x8x!tpu.dma_semaphore, #tpu.memory_space<semaphore_mem>> -> memref<1x1x!tpu.dma_semaphore, #tpu.memory_space<semaphore_mem>>
    %216 = tpu.memref_squeeze %215 : memref<1x1x!tpu.dma_semaphore, #tpu.memory_space<semaphore_mem>> -> memref<!tpu.dma_semaphore, #tpu.memory_space<semaphore_mem>>
    tpu.enqueue_dma source(%212 : memref<128xf32, #tpu.memory_space<any>>) target(%214 : memref<128xf32, #tpu.memory_space<vmem>>) target_semaphore(%216 : memref<!tpu.dma_semaphore, #tpu.memory_space<semaphore_mem>>)
    %c0_i32_136 = arith.constant 0 : i32
    %c0_i32_137 = arith.constant 0 : i32
    %c0_i32_138 = arith.constant 0 : i32
    %c0_i32_139 = arith.constant 0 : i32
    %217 = tpu.memref_slice %arg4[%3, %c0_i32_139] : memref<16x128xf32, #tpu.memory_space<any>> -> memref<1x128xf32, #tpu.memory_space<any>>
    %218 = tpu.memref_squeeze %217 : memref<1x128xf32, #tpu.memory_space<any>> -> memref<128xf32, #tpu.memory_space<any>>
    %c0_i32_140 = arith.constant 0 : i32
    %219 = tpu.memref_slice %arg9[%c0_i32_136, %c0_i32_140] : memref<8x128xf32, #tpu.memory_space<vmem>> -> memref<1x128xf32, #tpu.memory_space<vmem>>
    %220 = tpu.memref_squeeze %219 : memref<1x128xf32, #tpu.memory_space<vmem>> -> memref<128xf32, #tpu.memory_space<vmem>>
    %221 = tpu.memref_slice %arg12[%c0_i32_137, %c0_i32_138] : memref<3x8x!tpu.dma_semaphore, #tpu.memory_space<semaphore_mem>> -> memref<1x1x!tpu.dma_semaphore, #tpu.memory_space<semaphore_mem>>
    %222 = tpu.memref_squeeze %221 : memref<1x1x!tpu.dma_semaphore, #tpu.memory_space<semaphore_mem>> -> memref<!tpu.dma_semaphore, #tpu.memory_space<semaphore_mem>>
    tpu.wait_dma2 semaphore(%222 : memref<!tpu.dma_semaphore, #tpu.memory_space<semaphore_mem>>) src(%218 : memref<128xf32, #tpu.memory_space<any>>) dst(%220 : memref<128xf32, #tpu.memory_space<vmem>>)
    %c0_i32_141 = arith.constant 0 : i32
    %c1_i32_142 = arith.constant 1 : i32
    %c0_i32_143 = arith.constant 0 : i32
    %c0_i32_144 = arith.constant 0 : i32
    %223 = tpu.memref_slice %arg5[%6, %c0_i32_144] : memref<4x128xf32, #tpu.memory_space<any>> -> memref<1x128xf32, #tpu.memory_space<any>>
    %224 = tpu.memref_squeeze %223 : memref<1x128xf32, #tpu.memory_space<any>> -> memref<128xf32, #tpu.memory_space<any>>
    %c0_i32_145 = arith.constant 0 : i32
    %225 = tpu.memref_slice %arg10[%c0_i32_141, %c0_i32_145] : memref<8x128xf32, #tpu.memory_space<vmem>> -> memref<1x128xf32, #tpu.memory_space<vmem>>
    %226 = tpu.memref_squeeze %225 : memref<1x128xf32, #tpu.memory_space<vmem>> -> memref<128xf32, #tpu.memory_space<vmem>>
    %227 = tpu.memref_slice %arg12[%c1_i32_142, %c0_i32_143] : memref<3x8x!tpu.dma_semaphore, #tpu.memory_space<semaphore_mem>> -> memref<1x1x!tpu.dma_semaphore, #tpu.memory_space<semaphore_mem>>
    %228 = tpu.memref_squeeze %227 : memref<1x1x!tpu.dma_semaphore, #tpu.memory_space<semaphore_mem>> -> memref<!tpu.dma_semaphore, #tpu.memory_space<semaphore_mem>>
    tpu.wait_dma2 semaphore(%228 : memref<!tpu.dma_semaphore, #tpu.memory_space<semaphore_mem>>) src(%224 : memref<128xf32, #tpu.memory_space<any>>) dst(%226 : memref<128xf32, #tpu.memory_space<vmem>>)
    %c0_i32_146 = arith.constant 0 : i32
    %c2_i32_147 = arith.constant 2 : i32
    %c0_i32_148 = arith.constant 0 : i32
    %c0_i32_149 = arith.constant 0 : i32
    %229 = tpu.memref_slice %arg4[%9, %c0_i32_149] : memref<16x128xf32, #tpu.memory_space<any>> -> memref<1x128xf32, #tpu.memory_space<any>>
    %230 = tpu.memref_squeeze %229 : memref<1x128xf32, #tpu.memory_space<any>> -> memref<128xf32, #tpu.memory_space<any>>
    %c0_i32_150 = arith.constant 0 : i32
    %231 = tpu.memref_slice %arg11[%c0_i32_146, %c0_i32_150] : memref<8x128xf32, #tpu.memory_space<vmem>> -> memref<1x128xf32, #tpu.memory_space<vmem>>
    %232 = tpu.memref_squeeze %231 : memref<1x128xf32, #tpu.memory_space<vmem>> -> memref<128xf32, #tpu.memory_space<vmem>>
    %233 = tpu.memref_slice %arg12[%c2_i32_147, %c0_i32_148] : memref<3x8x!tpu.dma_semaphore, #tpu.memory_space<semaphore_mem>> -> memref<1x1x!tpu.dma_semaphore, #tpu.memory_space<semaphore_mem>>
    %234 = tpu.memref_squeeze %233 : memref<1x1x!tpu.dma_semaphore, #tpu.memory_space<semaphore_mem>> -> memref<!tpu.dma_semaphore, #tpu.memory_space<semaphore_mem>>
    tpu.wait_dma2 semaphore(%234 : memref<!tpu.dma_semaphore, #tpu.memory_space<semaphore_mem>>) src(%230 : memref<128xf32, #tpu.memory_space<any>>) dst(%232 : memref<128xf32, #tpu.memory_space<vmem>>)
    %c1_i32_151 = arith.constant 1 : i32
    %c0_i32_152 = arith.constant 0 : i32
    %c1_i32_153 = arith.constant 1 : i32
    %c0_i32_154 = arith.constant 0 : i32
    %235 = tpu.memref_slice %arg4[%30, %c0_i32_154] : memref<16x128xf32, #tpu.memory_space<any>> -> memref<1x128xf32, #tpu.memory_space<any>>
    %236 = tpu.memref_squeeze %235 : memref<1x128xf32, #tpu.memory_space<any>> -> memref<128xf32, #tpu.memory_space<any>>
    %c0_i32_155 = arith.constant 0 : i32
    %237 = tpu.memref_slice %arg9[%c1_i32_151, %c0_i32_155] : memref<8x128xf32, #tpu.memory_space<vmem>> -> memref<1x128xf32, #tpu.memory_space<vmem>>
    %238 = tpu.memref_squeeze %237 : memref<1x128xf32, #tpu.memory_space<vmem>> -> memref<128xf32, #tpu.memory_space<vmem>>
    %239 = tpu.memref_slice %arg12[%c0_i32_152, %c1_i32_153] : memref<3x8x!tpu.dma_semaphore, #tpu.memory_space<semaphore_mem>> -> memref<1x1x!tpu.dma_semaphore, #tpu.memory_space<semaphore_mem>>
    %240 = tpu.memref_squeeze %239 : memref<1x1x!tpu.dma_semaphore, #tpu.memory_space<semaphore_mem>> -> memref<!tpu.dma_semaphore, #tpu.memory_space<semaphore_mem>>
    tpu.wait_dma2 semaphore(%240 : memref<!tpu.dma_semaphore, #tpu.memory_space<semaphore_mem>>) src(%236 : memref<128xf32, #tpu.memory_space<any>>) dst(%238 : memref<128xf32, #tpu.memory_space<vmem>>)
    %c1_i32_156 = arith.constant 1 : i32
    %c1_i32_157 = arith.constant 1 : i32
    %c1_i32_158 = arith.constant 1 : i32
    %c0_i32_159 = arith.constant 0 : i32
    %241 = tpu.memref_slice %arg5[%33, %c0_i32_159] : memref<4x128xf32, #tpu.memory_space<any>> -> memref<1x128xf32, #tpu.memory_space<any>>
    %242 = tpu.memref_squeeze %241 : memref<1x128xf32, #tpu.memory_space<any>> -> memref<128xf32, #tpu.memory_space<any>>
    %c0_i32_160 = arith.constant 0 : i32
    %243 = tpu.memref_slice %arg10[%c1_i32_156, %c0_i32_160] : memref<8x128xf32, #tpu.memory_space<vmem>> -> memref<1x128xf32, #tpu.memory_space<vmem>>
    %244 = tpu.memref_squeeze %243 : memref<1x128xf32, #tpu.memory_space<vmem>> -> memref<128xf32, #tpu.memory_space<vmem>>
    %245 = tpu.memref_slice %arg12[%c1_i32_157, %c1_i32_158] : memref<3x8x!tpu.dma_semaphore, #tpu.memory_space<semaphore_mem>> -> memref<1x1x!tpu.dma_semaphore, #tpu.memory_space<semaphore_mem>>
    %246 = tpu.memref_squeeze %245 : memref<1x1x!tpu.dma_semaphore, #tpu.memory_space<semaphore_mem>> -> memref<!tpu.dma_semaphore, #tpu.memory_space<semaphore_mem>>
    tpu.wait_dma2 semaphore(%246 : memref<!tpu.dma_semaphore, #tpu.memory_space<semaphore_mem>>) src(%242 : memref<128xf32, #tpu.memory_space<any>>) dst(%244 : memref<128xf32, #tpu.memory_space<vmem>>)
    %c1_i32_161 = arith.constant 1 : i32
    %c2_i32_162 = arith.constant 2 : i32
    %c1_i32_163 = arith.constant 1 : i32
    %c0_i32_164 = arith.constant 0 : i32
    %247 = tpu.memref_slice %arg4[%36, %c0_i32_164] : memref<16x128xf32, #tpu.memory_space<any>> -> memref<1x128xf32, #tpu.memory_space<any>>
    %248 = tpu.memref_squeeze %247 : memref<1x128xf32, #tpu.memory_space<any>> -> memref<128xf32, #tpu.memory_space<any>>
    %c0_i32_165 = arith.constant 0 : i32
    %249 = tpu.memref_slice %arg11[%c1_i32_161, %c0_i32_165] : memref<8x128xf32, #tpu.memory_space<vmem>> -> memref<1x128xf32, #tpu.memory_space<vmem>>
    %250 = tpu.memref_squeeze %249 : memref<1x128xf32, #tpu.memory_space<vmem>> -> memref<128xf32, #tpu.memory_space<vmem>>
    %251 = tpu.memref_slice %arg12[%c2_i32_162, %c1_i32_163] : memref<3x8x!tpu.dma_semaphore, #tpu.memory_space<semaphore_mem>> -> memref<1x1x!tpu.dma_semaphore, #tpu.memory_space<semaphore_mem>>
    %252 = tpu.memref_squeeze %251 : memref<1x1x!tpu.dma_semaphore, #tpu.memory_space<semaphore_mem>> -> memref<!tpu.dma_semaphore, #tpu.memory_space<semaphore_mem>>
    tpu.wait_dma2 semaphore(%252 : memref<!tpu.dma_semaphore, #tpu.memory_space<semaphore_mem>>) src(%248 : memref<128xf32, #tpu.memory_space<any>>) dst(%250 : memref<128xf32, #tpu.memory_space<vmem>>)
    %c2_i32_166 = arith.constant 2 : i32
    %c0_i32_167 = arith.constant 0 : i32
    %c2_i32_168 = arith.constant 2 : i32
    %c0_i32_169 = arith.constant 0 : i32
    %253 = tpu.memref_slice %arg4[%57, %c0_i32_169] : memref<16x128xf32, #tpu.memory_space<any>> -> memref<1x128xf32, #tpu.memory_space<any>>
    %254 = tpu.memref_squeeze %253 : memref<1x128xf32, #tpu.memory_space<any>> -> memref<128xf32, #tpu.memory_space<any>>
    %c0_i32_170 = arith.constant 0 : i32
    %255 = tpu.memref_slice %arg9[%c2_i32_166, %c0_i32_170] : memref<8x128xf32, #tpu.memory_space<vmem>> -> memref<1x128xf32, #tpu.memory_space<vmem>>
    %256 = tpu.memref_squeeze %255 : memref<1x128xf32, #tpu.memory_space<vmem>> -> memref<128xf32, #tpu.memory_space<vmem>>
    %257 = tpu.memref_slice %arg12[%c0_i32_167, %c2_i32_168] : memref<3x8x!tpu.dma_semaphore, #tpu.memory_space<semaphore_mem>> -> memref<1x1x!tpu.dma_semaphore, #tpu.memory_space<semaphore_mem>>
    %258 = tpu.memref_squeeze %257 : memref<1x1x!tpu.dma_semaphore, #tpu.memory_space<semaphore_mem>> -> memref<!tpu.dma_semaphore, #tpu.memory_space<semaphore_mem>>
    tpu.wait_dma2 semaphore(%258 : memref<!tpu.dma_semaphore, #tpu.memory_space<semaphore_mem>>) src(%254 : memref<128xf32, #tpu.memory_space<any>>) dst(%256 : memref<128xf32, #tpu.memory_space<vmem>>)
    %c2_i32_171 = arith.constant 2 : i32
    %c1_i32_172 = arith.constant 1 : i32
    %c2_i32_173 = arith.constant 2 : i32
    %c0_i32_174 = arith.constant 0 : i32
    %259 = tpu.memref_slice %arg5[%60, %c0_i32_174] : memref<4x128xf32, #tpu.memory_space<any>> -> memref<1x128xf32, #tpu.memory_space<any>>
    %260 = tpu.memref_squeeze %259 : memref<1x128xf32, #tpu.memory_space<any>> -> memref<128xf32, #tpu.memory_space<any>>
    %c0_i32_175 = arith.constant 0 : i32
    %261 = tpu.memref_slice %arg10[%c2_i32_171, %c0_i32_175] : memref<8x128xf32, #tpu.memory_space<vmem>> -> memref<1x128xf32, #tpu.memory_space<vmem>>
    %262 = tpu.memref_squeeze %261 : memref<1x128xf32, #tpu.memory_space<vmem>> -> memref<128xf32, #tpu.memory_space<vmem>>
    %263 = tpu.memref_slice %arg12[%c1_i32_172, %c2_i32_173] : memref<3x8x!tpu.dma_semaphore, #tpu.memory_space<semaphore_mem>> -> memref<1x1x!tpu.dma_semaphore, #tpu.memory_space<semaphore_mem>>
    %264 = tpu.memref_squeeze %263 : memref<1x1x!tpu.dma_semaphore, #tpu.memory_space<semaphore_mem>> -> memref<!tpu.dma_semaphore, #tpu.memory_space<semaphore_mem>>
    tpu.wait_dma2 semaphore(%264 : memref<!tpu.dma_semaphore, #tpu.memory_space<semaphore_mem>>) src(%260 : memref<128xf32, #tpu.memory_space<any>>) dst(%262 : memref<128xf32, #tpu.memory_space<vmem>>)
    %c2_i32_176 = arith.constant 2 : i32
    %c2_i32_177 = arith.constant 2 : i32
    %c2_i32_178 = arith.constant 2 : i32
    %c0_i32_179 = arith.constant 0 : i32
    %265 = tpu.memref_slice %arg4[%63, %c0_i32_179] : memref<16x128xf32, #tpu.memory_space<any>> -> memref<1x128xf32, #tpu.memory_space<any>>
    %266 = tpu.memref_squeeze %265 : memref<1x128xf32, #tpu.memory_space<any>> -> memref<128xf32, #tpu.memory_space<any>>
    %c0_i32_180 = arith.constant 0 : i32
    %267 = tpu.memref_slice %arg11[%c2_i32_176, %c0_i32_180] : memref<8x128xf32, #tpu.memory_space<vmem>> -> memref<1x128xf32, #tpu.memory_space<vmem>>
    %268 = tpu.memref_squeeze %267 : memref<1x128xf32, #tpu.memory_space<vmem>> -> memref<128xf32, #tpu.memory_space<vmem>>
    %269 = tpu.memref_slice %arg12[%c2_i32_177, %c2_i32_178] : memref<3x8x!tpu.dma_semaphore, #tpu.memory_space<semaphore_mem>> -> memref<1x1x!tpu.dma_semaphore, #tpu.memory_space<semaphore_mem>>
    %270 = tpu.memref_squeeze %269 : memref<1x1x!tpu.dma_semaphore, #tpu.memory_space<semaphore_mem>> -> memref<!tpu.dma_semaphore, #tpu.memory_space<semaphore_mem>>
    tpu.wait_dma2 semaphore(%270 : memref<!tpu.dma_semaphore, #tpu.memory_space<semaphore_mem>>) src(%266 : memref<128xf32, #tpu.memory_space<any>>) dst(%268 : memref<128xf32, #tpu.memory_space<vmem>>)
    %c3_i32_181 = arith.constant 3 : i32
    %c0_i32_182 = arith.constant 0 : i32
    %c3_i32_183 = arith.constant 3 : i32
    %c0_i32_184 = arith.constant 0 : i32
    %271 = tpu.memref_slice %arg4[%84, %c0_i32_184] : memref<16x128xf32, #tpu.memory_space<any>> -> memref<1x128xf32, #tpu.memory_space<any>>
    %272 = tpu.memref_squeeze %271 : memref<1x128xf32, #tpu.memory_space<any>> -> memref<128xf32, #tpu.memory_space<any>>
    %c0_i32_185 = arith.constant 0 : i32
    %273 = tpu.memref_slice %arg9[%c3_i32_181, %c0_i32_185] : memref<8x128xf32, #tpu.memory_space<vmem>> -> memref<1x128xf32, #tpu.memory_space<vmem>>
    %274 = tpu.memref_squeeze %273 : memref<1x128xf32, #tpu.memory_space<vmem>> -> memref<128xf32, #tpu.memory_space<vmem>>
    %275 = tpu.memref_slice %arg12[%c0_i32_182, %c3_i32_183] : memref<3x8x!tpu.dma_semaphore, #tpu.memory_space<semaphore_mem>> -> memref<1x1x!tpu.dma_semaphore, #tpu.memory_space<semaphore_mem>>
    %276 = tpu.memref_squeeze %275 : memref<1x1x!tpu.dma_semaphore, #tpu.memory_space<semaphore_mem>> -> memref<!tpu.dma_semaphore, #tpu.memory_space<semaphore_mem>>
    tpu.wait_dma2 semaphore(%276 : memref<!tpu.dma_semaphore, #tpu.memory_space<semaphore_mem>>) src(%272 : memref<128xf32, #tpu.memory_space<any>>) dst(%274 : memref<128xf32, #tpu.memory_space<vmem>>)
    %c3_i32_186 = arith.constant 3 : i32
    %c1_i32_187 = arith.constant 1 : i32
    %c3_i32_188 = arith.constant 3 : i32
    %c0_i32_189 = arith.constant 0 : i32
    %277 = tpu.memref_slice %arg5[%87, %c0_i32_189] : memref<4x128xf32, #tpu.memory_space<any>> -> memref<1x128xf32, #tpu.memory_space<any>>
    %278 = tpu.memref_squeeze %277 : memref<1x128xf32, #tpu.memory_space<any>> -> memref<128xf32, #tpu.memory_space<any>>
    %c0_i32_190 = arith.constant 0 : i32
    %279 = tpu.memref_slice %arg10[%c3_i32_186, %c0_i32_190] : memref<8x128xf32, #tpu.memory_space<vmem>> -> memref<1x128xf32, #tpu.memory_space<vmem>>
    %280 = tpu.memref_squeeze %279 : memref<1x128xf32, #tpu.memory_space<vmem>> -> memref<128xf32, #tpu.memory_space<vmem>>
    %281 = tpu.memref_slice %arg12[%c1_i32_187, %c3_i32_188] : memref<3x8x!tpu.dma_semaphore, #tpu.memory_space<semaphore_mem>> -> memref<1x1x!tpu.dma_semaphore, #tpu.memory_space<semaphore_mem>>
    %282 = tpu.memref_squeeze %281 : memref<1x1x!tpu.dma_semaphore, #tpu.memory_space<semaphore_mem>> -> memref<!tpu.dma_semaphore, #tpu.memory_space<semaphore_mem>>
    tpu.wait_dma2 semaphore(%282 : memref<!tpu.dma_semaphore, #tpu.memory_space<semaphore_mem>>) src(%278 : memref<128xf32, #tpu.memory_space<any>>) dst(%280 : memref<128xf32, #tpu.memory_space<vmem>>)
    %c3_i32_191 = arith.constant 3 : i32
    %c2_i32_192 = arith.constant 2 : i32
    %c3_i32_193 = arith.constant 3 : i32
    %c0_i32_194 = arith.constant 0 : i32
    %283 = tpu.memref_slice %arg4[%90, %c0_i32_194] : memref<16x128xf32, #tpu.memory_space<any>> -> memref<1x128xf32, #tpu.memory_space<any>>
    %284 = tpu.memref_squeeze %283 : memref<1x128xf32, #tpu.memory_space<any>> -> memref<128xf32, #tpu.memory_space<any>>
    %c0_i32_195 = arith.constant 0 : i32
    %285 = tpu.memref_slice %arg11[%c3_i32_191, %c0_i32_195] : memref<8x128xf32, #tpu.memory_space<vmem>> -> memref<1x128xf32, #tpu.memory_space<vmem>>
    %286 = tpu.memref_squeeze %285 : memref<1x128xf32, #tpu.memory_space<vmem>> -> memref<128xf32, #tpu.memory_space<vmem>>
    %287 = tpu.memref_slice %arg12[%c2_i32_192, %c3_i32_193] : memref<3x8x!tpu.dma_semaphore, #tpu.memory_space<semaphore_mem>> -> memref<1x1x!tpu.dma_semaphore, #tpu.memory_space<semaphore_mem>>
    %288 = tpu.memref_squeeze %287 : memref<1x1x!tpu.dma_semaphore, #tpu.memory_space<semaphore_mem>> -> memref<!tpu.dma_semaphore, #tpu.memory_space<semaphore_mem>>
    tpu.wait_dma2 semaphore(%288 : memref<!tpu.dma_semaphore, #tpu.memory_space<semaphore_mem>>) src(%284 : memref<128xf32, #tpu.memory_space<any>>) dst(%286 : memref<128xf32, #tpu.memory_space<vmem>>)
    %c4_i32_196 = arith.constant 4 : i32
    %c0_i32_197 = arith.constant 0 : i32
    %c4_i32_198 = arith.constant 4 : i32
    %c0_i32_199 = arith.constant 0 : i32
    %289 = tpu.memref_slice %arg4[%111, %c0_i32_199] : memref<16x128xf32, #tpu.memory_space<any>> -> memref<1x128xf32, #tpu.memory_space<any>>
    %290 = tpu.memref_squeeze %289 : memref<1x128xf32, #tpu.memory_space<any>> -> memref<128xf32, #tpu.memory_space<any>>
    %c0_i32_200 = arith.constant 0 : i32
    %291 = tpu.memref_slice %arg9[%c4_i32_196, %c0_i32_200] : memref<8x128xf32, #tpu.memory_space<vmem>> -> memref<1x128xf32, #tpu.memory_space<vmem>>
    %292 = tpu.memref_squeeze %291 : memref<1x128xf32, #tpu.memory_space<vmem>> -> memref<128xf32, #tpu.memory_space<vmem>>
    %293 = tpu.memref_slice %arg12[%c0_i32_197, %c4_i32_198] : memref<3x8x!tpu.dma_semaphore, #tpu.memory_space<semaphore_mem>> -> memref<1x1x!tpu.dma_semaphore, #tpu.memory_space<semaphore_mem>>
    %294 = tpu.memref_squeeze %293 : memref<1x1x!tpu.dma_semaphore, #tpu.memory_space<semaphore_mem>> -> memref<!tpu.dma_semaphore, #tpu.memory_space<semaphore_mem>>
    tpu.wait_dma2 semaphore(%294 : memref<!tpu.dma_semaphore, #tpu.memory_space<semaphore_mem>>) src(%290 : memref<128xf32, #tpu.memory_space<any>>) dst(%292 : memref<128xf32, #tpu.memory_space<vmem>>)
    %c4_i32_201 = arith.constant 4 : i32
    %c1_i32_202 = arith.constant 1 : i32
    %c4_i32_203 = arith.constant 4 : i32
    %c0_i32_204 = arith.constant 0 : i32
    %295 = tpu.memref_slice %arg5[%114, %c0_i32_204] : memref<4x128xf32, #tpu.memory_space<any>> -> memref<1x128xf32, #tpu.memory_space<any>>
    %296 = tpu.memref_squeeze %295 : memref<1x128xf32, #tpu.memory_space<any>> -> memref<128xf32, #tpu.memory_space<any>>
    %c0_i32_205 = arith.constant 0 : i32
    %297 = tpu.memref_slice %arg10[%c4_i32_201, %c0_i32_205] : memref<8x128xf32, #tpu.memory_space<vmem>> -> memref<1x128xf32, #tpu.memory_space<vmem>>
    %298 = tpu.memref_squeeze %297 : memref<1x128xf32, #tpu.memory_space<vmem>> -> memref<128xf32, #tpu.memory_space<vmem>>
    %299 = tpu.memref_slice %arg12[%c1_i32_202, %c4_i32_203] : memref<3x8x!tpu.dma_semaphore, #tpu.memory_space<semaphore_mem>> -> memref<1x1x!tpu.dma_semaphore, #tpu.memory_space<semaphore_mem>>
    %300 = tpu.memref_squeeze %299 : memref<1x1x!tpu.dma_semaphore, #tpu.memory_space<semaphore_mem>> -> memref<!tpu.dma_semaphore, #tpu.memory_space<semaphore_mem>>
    tpu.wait_dma2 semaphore(%300 : memref<!tpu.dma_semaphore, #tpu.memory_space<semaphore_mem>>) src(%296 : memref<128xf32, #tpu.memory_space<any>>) dst(%298 : memref<128xf32, #tpu.memory_space<vmem>>)
    %c4_i32_206 = arith.constant 4 : i32
    %c2_i32_207 = arith.constant 2 : i32
    %c4_i32_208 = arith.constant 4 : i32
    %c0_i32_209 = arith.constant 0 : i32
    %301 = tpu.memref_slice %arg4[%117, %c0_i32_209] : memref<16x128xf32, #tpu.memory_space<any>> -> memref<1x128xf32, #tpu.memory_space<any>>
    %302 = tpu.memref_squeeze %301 : memref<1x128xf32, #tpu.memory_space<any>> -> memref<128xf32, #tpu.memory_space<any>>
    %c0_i32_210 = arith.constant 0 : i32
    %303 = tpu.memref_slice %arg11[%c4_i32_206, %c0_i32_210] : memref<8x128xf32, #tpu.memory_space<vmem>> -> memref<1x128xf32, #tpu.memory_space<vmem>>
    %304 = tpu.memref_squeeze %303 : memref<1x128xf32, #tpu.memory_space<vmem>> -> memref<128xf32, #tpu.memory_space<vmem>>
    %305 = tpu.memref_slice %arg12[%c2_i32_207, %c4_i32_208] : memref<3x8x!tpu.dma_semaphore, #tpu.memory_space<semaphore_mem>> -> memref<1x1x!tpu.dma_semaphore, #tpu.memory_space<semaphore_mem>>
    %306 = tpu.memref_squeeze %305 : memref<1x1x!tpu.dma_semaphore, #tpu.memory_space<semaphore_mem>> -> memref<!tpu.dma_semaphore, #tpu.memory_space<semaphore_mem>>
    tpu.wait_dma2 semaphore(%306 : memref<!tpu.dma_semaphore, #tpu.memory_space<semaphore_mem>>) src(%302 : memref<128xf32, #tpu.memory_space<any>>) dst(%304 : memref<128xf32, #tpu.memory_space<vmem>>)
    %c5_i32_211 = arith.constant 5 : i32
    %c0_i32_212 = arith.constant 0 : i32
    %c5_i32_213 = arith.constant 5 : i32
    %c0_i32_214 = arith.constant 0 : i32
    %307 = tpu.memref_slice %arg4[%138, %c0_i32_214] : memref<16x128xf32, #tpu.memory_space<any>> -> memref<1x128xf32, #tpu.memory_space<any>>
    %308 = tpu.memref_squeeze %307 : memref<1x128xf32, #tpu.memory_space<any>> -> memref<128xf32, #tpu.memory_space<any>>
    %c0_i32_215 = arith.constant 0 : i32
    %309 = tpu.memref_slice %arg9[%c5_i32_211, %c0_i32_215] : memref<8x128xf32, #tpu.memory_space<vmem>> -> memref<1x128xf32, #tpu.memory_space<vmem>>
    %310 = tpu.memref_squeeze %309 : memref<1x128xf32, #tpu.memory_space<vmem>> -> memref<128xf32, #tpu.memory_space<vmem>>
    %311 = tpu.memref_slice %arg12[%c0_i32_212, %c5_i32_213] : memref<3x8x!tpu.dma_semaphore, #tpu.memory_space<semaphore_mem>> -> memref<1x1x!tpu.dma_semaphore, #tpu.memory_space<semaphore_mem>>
    %312 = tpu.memref_squeeze %311 : memref<1x1x!tpu.dma_semaphore, #tpu.memory_space<semaphore_mem>> -> memref<!tpu.dma_semaphore, #tpu.memory_space<semaphore_mem>>
    tpu.wait_dma2 semaphore(%312 : memref<!tpu.dma_semaphore, #tpu.memory_space<semaphore_mem>>) src(%308 : memref<128xf32, #tpu.memory_space<any>>) dst(%310 : memref<128xf32, #tpu.memory_space<vmem>>)
    %c5_i32_216 = arith.constant 5 : i32
    %c1_i32_217 = arith.constant 1 : i32
    %c5_i32_218 = arith.constant 5 : i32
    %c0_i32_219 = arith.constant 0 : i32
    %313 = tpu.memref_slice %arg5[%141, %c0_i32_219] : memref<4x128xf32, #tpu.memory_space<any>> -> memref<1x128xf32, #tpu.memory_space<any>>
    %314 = tpu.memref_squeeze %313 : memref<1x128xf32, #tpu.memory_space<any>> -> memref<128xf32, #tpu.memory_space<any>>
    %c0_i32_220 = arith.constant 0 : i32
    %315 = tpu.memref_slice %arg10[%c5_i32_216, %c0_i32_220] : memref<8x128xf32, #tpu.memory_space<vmem>> -> memref<1x128xf32, #tpu.memory_space<vmem>>
    %316 = tpu.memref_squeeze %315 : memref<1x128xf32, #tpu.memory_space<vmem>> -> memref<128xf32, #tpu.memory_space<vmem>>
    %317 = tpu.memref_slice %arg12[%c1_i32_217, %c5_i32_218] : memref<3x8x!tpu.dma_semaphore, #tpu.memory_space<semaphore_mem>> -> memref<1x1x!tpu.dma_semaphore, #tpu.memory_space<semaphore_mem>>
    %318 = tpu.memref_squeeze %317 : memref<1x1x!tpu.dma_semaphore, #tpu.memory_space<semaphore_mem>> -> memref<!tpu.dma_semaphore, #tpu.memory_space<semaphore_mem>>
    tpu.wait_dma2 semaphore(%318 : memref<!tpu.dma_semaphore, #tpu.memory_space<semaphore_mem>>) src(%314 : memref<128xf32, #tpu.memory_space<any>>) dst(%316 : memref<128xf32, #tpu.memory_space<vmem>>)
    %c5_i32_221 = arith.constant 5 : i32
    %c2_i32_222 = arith.constant 2 : i32
    %c5_i32_223 = arith.constant 5 : i32
    %c0_i32_224 = arith.constant 0 : i32
    %319 = tpu.memref_slice %arg4[%144, %c0_i32_224] : memref<16x128xf32, #tpu.memory_space<any>> -> memref<1x128xf32, #tpu.memory_space<any>>
    %320 = tpu.memref_squeeze %319 : memref<1x128xf32, #tpu.memory_space<any>> -> memref<128xf32, #tpu.memory_space<any>>
    %c0_i32_225 = arith.constant 0 : i32
    %321 = tpu.memref_slice %arg11[%c5_i32_221, %c0_i32_225] : memref<8x128xf32, #tpu.memory_space<vmem>> -> memref<1x128xf32, #tpu.memory_space<vmem>>
    %322 = tpu.memref_squeeze %321 : memref<1x128xf32, #tpu.memory_space<vmem>> -> memref<128xf32, #tpu.memory_space<vmem>>
    %323 = tpu.memref_slice %arg12[%c2_i32_222, %c5_i32_223] : memref<3x8x!tpu.dma_semaphore, #tpu.memory_space<semaphore_mem>> -> memref<1x1x!tpu.dma_semaphore, #tpu.memory_space<semaphore_mem>>
    %324 = tpu.memref_squeeze %323 : memref<1x1x!tpu.dma_semaphore, #tpu.memory_space<semaphore_mem>> -> memref<!tpu.dma_semaphore, #tpu.memory_space<semaphore_mem>>
    tpu.wait_dma2 semaphore(%324 : memref<!tpu.dma_semaphore, #tpu.memory_space<semaphore_mem>>) src(%320 : memref<128xf32, #tpu.memory_space<any>>) dst(%322 : memref<128xf32, #tpu.memory_space<vmem>>)
    %c6_i32_226 = arith.constant 6 : i32
    %c0_i32_227 = arith.constant 0 : i32
    %c6_i32_228 = arith.constant 6 : i32
    %c0_i32_229 = arith.constant 0 : i32
    %325 = tpu.memref_slice %arg4[%165, %c0_i32_229] : memref<16x128xf32, #tpu.memory_space<any>> -> memref<1x128xf32, #tpu.memory_space<any>>
    %326 = tpu.memref_squeeze %325 : memref<1x128xf32, #tpu.memory_space<any>> -> memref<128xf32, #tpu.memory_space<any>>
    %c0_i32_230 = arith.constant 0 : i32
    %327 = tpu.memref_slice %arg9[%c6_i32_226, %c0_i32_230] : memref<8x128xf32, #tpu.memory_space<vmem>> -> memref<1x128xf32, #tpu.memory_space<vmem>>
    %328 = tpu.memref_squeeze %327 : memref<1x128xf32, #tpu.memory_space<vmem>> -> memref<128xf32, #tpu.memory_space<vmem>>
    %329 = tpu.memref_slice %arg12[%c0_i32_227, %c6_i32_228] : memref<3x8x!tpu.dma_semaphore, #tpu.memory_space<semaphore_mem>> -> memref<1x1x!tpu.dma_semaphore, #tpu.memory_space<semaphore_mem>>
    %330 = tpu.memref_squeeze %329 : memref<1x1x!tpu.dma_semaphore, #tpu.memory_space<semaphore_mem>> -> memref<!tpu.dma_semaphore, #tpu.memory_space<semaphore_mem>>
    tpu.wait_dma2 semaphore(%330 : memref<!tpu.dma_semaphore, #tpu.memory_space<semaphore_mem>>) src(%326 : memref<128xf32, #tpu.memory_space<any>>) dst(%328 : memref<128xf32, #tpu.memory_space<vmem>>)
    %c6_i32_231 = arith.constant 6 : i32
    %c1_i32_232 = arith.constant 1 : i32
    %c6_i32_233 = arith.constant 6 : i32
    %c0_i32_234 = arith.constant 0 : i32
    %331 = tpu.memref_slice %arg5[%168, %c0_i32_234] : memref<4x128xf32, #tpu.memory_space<any>> -> memref<1x128xf32, #tpu.memory_space<any>>
    %332 = tpu.memref_squeeze %331 : memref<1x128xf32, #tpu.memory_space<any>> -> memref<128xf32, #tpu.memory_space<any>>
    %c0_i32_235 = arith.constant 0 : i32
    %333 = tpu.memref_slice %arg10[%c6_i32_231, %c0_i32_235] : memref<8x128xf32, #tpu.memory_space<vmem>> -> memref<1x128xf32, #tpu.memory_space<vmem>>
    %334 = tpu.memref_squeeze %333 : memref<1x128xf32, #tpu.memory_space<vmem>> -> memref<128xf32, #tpu.memory_space<vmem>>
    %335 = tpu.memref_slice %arg12[%c1_i32_232, %c6_i32_233] : memref<3x8x!tpu.dma_semaphore, #tpu.memory_space<semaphore_mem>> -> memref<1x1x!tpu.dma_semaphore, #tpu.memory_space<semaphore_mem>>
    %336 = tpu.memref_squeeze %335 : memref<1x1x!tpu.dma_semaphore, #tpu.memory_space<semaphore_mem>> -> memref<!tpu.dma_semaphore, #tpu.memory_space<semaphore_mem>>
    tpu.wait_dma2 semaphore(%336 : memref<!tpu.dma_semaphore, #tpu.memory_space<semaphore_mem>>) src(%332 : memref<128xf32, #tpu.memory_space<any>>) dst(%334 : memref<128xf32, #tpu.memory_space<vmem>>)
    %c6_i32_236 = arith.constant 6 : i32
    %c2_i32_237 = arith.constant 2 : i32
    %c6_i32_238 = arith.constant 6 : i32
    %c0_i32_239 = arith.constant 0 : i32
    %337 = tpu.memref_slice %arg4[%171, %c0_i32_239] : memref<16x128xf32, #tpu.memory_space<any>> -> memref<1x128xf32, #tpu.memory_space<any>>
    %338 = tpu.memref_squeeze %337 : memref<1x128xf32, #tpu.memory_space<any>> -> memref<128xf32, #tpu.memory_space<any>>
    %c0_i32_240 = arith.constant 0 : i32
    %339 = tpu.memref_slice %arg11[%c6_i32_236, %c0_i32_240] : memref<8x128xf32, #tpu.memory_space<vmem>> -> memref<1x128xf32, #tpu.memory_space<vmem>>
    %340 = tpu.memref_squeeze %339 : memref<1x128xf32, #tpu.memory_space<vmem>> -> memref<128xf32, #tpu.memory_space<vmem>>
    %341 = tpu.memref_slice %arg12[%c2_i32_237, %c6_i32_238] : memref<3x8x!tpu.dma_semaphore, #tpu.memory_space<semaphore_mem>> -> memref<1x1x!tpu.dma_semaphore, #tpu.memory_space<semaphore_mem>>
    %342 = tpu.memref_squeeze %341 : memref<1x1x!tpu.dma_semaphore, #tpu.memory_space<semaphore_mem>> -> memref<!tpu.dma_semaphore, #tpu.memory_space<semaphore_mem>>
    tpu.wait_dma2 semaphore(%342 : memref<!tpu.dma_semaphore, #tpu.memory_space<semaphore_mem>>) src(%338 : memref<128xf32, #tpu.memory_space<any>>) dst(%340 : memref<128xf32, #tpu.memory_space<vmem>>)
    %c7_i32_241 = arith.constant 7 : i32
    %c0_i32_242 = arith.constant 0 : i32
    %c7_i32_243 = arith.constant 7 : i32
    %c0_i32_244 = arith.constant 0 : i32
    %343 = tpu.memref_slice %arg4[%192, %c0_i32_244] : memref<16x128xf32, #tpu.memory_space<any>> -> memref<1x128xf32, #tpu.memory_space<any>>
    %344 = tpu.memref_squeeze %343 : memref<1x128xf32, #tpu.memory_space<any>> -> memref<128xf32, #tpu.memory_space<any>>
    %c0_i32_245 = arith.constant 0 : i32
    %345 = tpu.memref_slice %arg9[%c7_i32_241, %c0_i32_245] : memref<8x128xf32, #tpu.memory_space<vmem>> -> memref<1x128xf32, #tpu.memory_space<vmem>>
    %346 = tpu.memref_squeeze %345 : memref<1x128xf32, #tpu.memory_space<vmem>> -> memref<128xf32, #tpu.memory_space<vmem>>
    %347 = tpu.memref_slice %arg12[%c0_i32_242, %c7_i32_243] : memref<3x8x!tpu.dma_semaphore, #tpu.memory_space<semaphore_mem>> -> memref<1x1x!tpu.dma_semaphore, #tpu.memory_space<semaphore_mem>>
    %348 = tpu.memref_squeeze %347 : memref<1x1x!tpu.dma_semaphore, #tpu.memory_space<semaphore_mem>> -> memref<!tpu.dma_semaphore, #tpu.memory_space<semaphore_mem>>
    tpu.wait_dma2 semaphore(%348 : memref<!tpu.dma_semaphore, #tpu.memory_space<semaphore_mem>>) src(%344 : memref<128xf32, #tpu.memory_space<any>>) dst(%346 : memref<128xf32, #tpu.memory_space<vmem>>)
    %c7_i32_246 = arith.constant 7 : i32
    %c1_i32_247 = arith.constant 1 : i32
    %c7_i32_248 = arith.constant 7 : i32
    %c0_i32_249 = arith.constant 0 : i32
    %349 = tpu.memref_slice %arg5[%195, %c0_i32_249] : memref<4x128xf32, #tpu.memory_space<any>> -> memref<1x128xf32, #tpu.memory_space<any>>
    %350 = tpu.memref_squeeze %349 : memref<1x128xf32, #tpu.memory_space<any>> -> memref<128xf32, #tpu.memory_space<any>>
    %c0_i32_250 = arith.constant 0 : i32
    %351 = tpu.memref_slice %arg10[%c7_i32_246, %c0_i32_250] : memref<8x128xf32, #tpu.memory_space<vmem>> -> memref<1x128xf32, #tpu.memory_space<vmem>>
    %352 = tpu.memref_squeeze %351 : memref<1x128xf32, #tpu.memory_space<vmem>> -> memref<128xf32, #tpu.memory_space<vmem>>
    %353 = tpu.memref_slice %arg12[%c1_i32_247, %c7_i32_248] : memref<3x8x!tpu.dma_semaphore, #tpu.memory_space<semaphore_mem>> -> memref<1x1x!tpu.dma_semaphore, #tpu.memory_space<semaphore_mem>>
    %354 = tpu.memref_squeeze %353 : memref<1x1x!tpu.dma_semaphore, #tpu.memory_space<semaphore_mem>> -> memref<!tpu.dma_semaphore, #tpu.memory_space<semaphore_mem>>
    tpu.wait_dma2 semaphore(%354 : memref<!tpu.dma_semaphore, #tpu.memory_space<semaphore_mem>>) src(%350 : memref<128xf32, #tpu.memory_space<any>>) dst(%352 : memref<128xf32, #tpu.memory_space<vmem>>)
    %c7_i32_251 = arith.constant 7 : i32
    %c2_i32_252 = arith.constant 2 : i32
    %c7_i32_253 = arith.constant 7 : i32
    %c0_i32_254 = arith.constant 0 : i32
    %355 = tpu.memref_slice %arg4[%198, %c0_i32_254] : memref<16x128xf32, #tpu.memory_space<any>> -> memref<1x128xf32, #tpu.memory_space<any>>
    %356 = tpu.memref_squeeze %355 : memref<1x128xf32, #tpu.memory_space<any>> -> memref<128xf32, #tpu.memory_space<any>>
    %c0_i32_255 = arith.constant 0 : i32
    %357 = tpu.memref_slice %arg11[%c7_i32_251, %c0_i32_255] : memref<8x128xf32, #tpu.memory_space<vmem>> -> memref<1x128xf32, #tpu.memory_space<vmem>>
    %358 = tpu.memref_squeeze %357 : memref<1x128xf32, #tpu.memory_space<vmem>> -> memref<128xf32, #tpu.memory_space<vmem>>
    %359 = tpu.memref_slice %arg12[%c2_i32_252, %c7_i32_253] : memref<3x8x!tpu.dma_semaphore, #tpu.memory_space<semaphore_mem>> -> memref<1x1x!tpu.dma_semaphore, #tpu.memory_space<semaphore_mem>>
    %360 = tpu.memref_squeeze %359 : memref<1x1x!tpu.dma_semaphore, #tpu.memory_space<semaphore_mem>> -> memref<!tpu.dma_semaphore, #tpu.memory_space<semaphore_mem>>
    tpu.wait_dma2 semaphore(%360 : memref<!tpu.dma_semaphore, #tpu.memory_space<semaphore_mem>>) src(%356 : memref<128xf32, #tpu.memory_space<any>>) dst(%358 : memref<128xf32, #tpu.memory_space<vmem>>)
    %c0 = arith.constant 0 : index
    %c0_256 = arith.constant 0 : index
    %361 = vector.load %arg9[%c0, %c0_256] : memref<8x128xf32, #tpu.memory_space<vmem>>, vector<8x128xf32>
    %c0_257 = arith.constant 0 : index
    %c0_258 = arith.constant 0 : index
    %362 = vector.load %arg6[%c0_257, %c0_258] : memref<8x128xf32, #tpu.memory_space<vmem>>, vector<8x128xf32>
    tpu.vector_store %arg6[%c0_257, %c0_258], %361 {strides = array<i32>} : memref<8x128xf32, #tpu.memory_space<vmem>>, vector<8x128xf32>,
    %c0_259 = arith.constant 0 : index
    %c0_260 = arith.constant 0 : index
    %363 = vector.load %arg10[%c0_259, %c0_260] : memref<8x128xf32, #tpu.memory_space<vmem>>, vector<8x128xf32>
    %c0_261 = arith.constant 0 : index
    %c0_262 = arith.constant 0 : index
    %364 = vector.load %arg7[%c0_261, %c0_262] : memref<8x128xf32, #tpu.memory_space<vmem>>, vector<8x128xf32>
    tpu.vector_store %arg7[%c0_261, %c0_262], %363 {strides = array<i32>} : memref<8x128xf32, #tpu.memory_space<vmem>>, vector<8x128xf32>,
    %c0_263 = arith.constant 0 : index
    %c0_264 = arith.constant 0 : index
    %365 = vector.load %arg11[%c0_263, %c0_264] : memref<8x128xf32, #tpu.memory_space<vmem>>, vector<8x128xf32>
    %c0_265 = arith.constant 0 : index
    %c0_266 = arith.constant 0 : index
    %366 = vector.load %arg8[%c0_265, %c0_266] : memref<8x128xf32, #tpu.memory_space<vmem>>, vector<8x128xf32>
    tpu.vector_store %arg8[%c0_265, %c0_266], %365 {strides = array<i32>} : memref<8x128xf32, #tpu.memory_space<vmem>>, vector<8x128xf32>,
    return
  }
  func.func @transform_2(%arg0: i32, %arg1: memref<8xi32, #tpu.memory_space<smem>>, %arg2: memref<8xi32, #tpu.memory_space<smem>>, %arg3: memref<8xi32, #tpu.memory_space<smem>>) -> (i32, i32) {
    %c0_i32 = arith.constant 0 : i32
    %c0_i32_0 = arith.constant 0 : i32
    return %arg0, %c0_i32 : i32, i32
  }
  func.func @transform_3(%arg0: i32, %arg1: memref<8xi32, #tpu.memory_space<smem>>, %arg2: memref<8xi32, #tpu.memory_space<smem>>, %arg3: memref<8xi32, #tpu.memory_space<smem>>) -> (i32, i32) {
    %c0_i32 = arith.constant 0 : i32
    %c0_i32_0 = arith.constant 0 : i32
    return %arg0, %c0_i32 : i32, i32
  }
  func.func @transform_4(%arg0: i32, %arg1: memref<8xi32, #tpu.memory_space<smem>>, %arg2: memref<8xi32, #tpu.memory_space<smem>>, %arg3: memref<8xi32, #tpu.memory_space<smem>>) -> (i32, i32) {
    %c0_i32 = arith.constant 0 : i32
    %c0_i32_0 = arith.constant 0 : i32
    return %arg0, %c0_i32 : i32, i32
  }
}

</mosaic_0001>

<llo_original>
// kernel: tpu_custom_call.1
$region0: #{tpu_custom_call.1}
  #allocation0 [shape = 'u32[]', space=smem, size = 0x4, offset = 0x4, fixed_abs, tag = 'smem constant byte address 0x4 - core index']
  #allocation1 [shape = 'u32[144,128]{1,0:T(1,128)}', space=vmem, size = 0x12000, scoped, tag = 'internal scratch']
  #allocation2 [shape = 'f32[8,128]{1,0:T(8,128)}', space=vmem, size = 0x1000, scoped, tag = 'scratch operand']
  #allocation3 [shape = 'f32[8,128]{1,0:T(8,128)}', space=vmem, size = 0x1000, scoped, tag = 'scratch operand']
  #allocation4 [shape = 'f32[8,128]{1,0:T(8,128)}', space=vmem, size = 0x1000, scoped, tag = 'scratch operand']
  #allocation5 [shape = 's32[24]{0}', space=sflag, size = 0x60, scoped, tag = 'scratch operand']
  #allocation6 [shape = 's32[1]{0}', space=sflag, size = 0x4, scoped, tag = 'scoped memory for tpu_custom_call.1']
  #allocation7 [shape = 'u8[512]{0}', space=smem, size = 0x200, scoped, tag = 'prefetched SMEM operand 0']
  #allocation8 [shape = 'u8[512]{0}', space=smem, size = 0x200, scoped, tag = 'prefetched SMEM operand 1']
  #allocation9 [shape = 'u8[512]{0}', space=smem, size = 0x200, scoped, tag = 'prefetched SMEM operand 2']
  #allocation15 [shape = 's32[]', space=sflag, size = 0x4, offset = 0, fixed_abs, tag = 'sflag constant byte address 0x0 - dummy sync flag']
  #allocation16 [shape = 's32[]', space=sflag, size = 0x4, offset = 0, fixed_abs, tag = 'sflag constant byte address 0x0 - dummy sync flag']
  #allocation17 [shape = 'u32[]', space=smem, size = 0x4, offset = 0x44, fixed_abs, tag = 'smem constant byte address 0x44 - assertion arg 0']
  #allocation18 [shape = 'u32[]', space=smem, size = 0x4, offset = 0x48, fixed_abs, tag = 'smem constant byte address 0x48 - assertion arg 1']
  #allocation19 [shape = 's32[]', space=sflag, size = 0x4, offset = 0, fixed_abs, tag = 'sflag constant byte address 0x0 - dummy sync flag']
  #allocation20 [shape = 's32[]', space=sflag, size = 0x4, offset = 0, fixed_abs, tag = 'sflag constant byte address 0x0 - dummy sync flag']
  #allocation21 [shape = 's32[]', space=sflag, size = 0x4, offset = 0, fixed_abs, tag = 'sflag constant byte address 0x0 - dummy sync flag']
  #allocation22 [shape = 's32[]', space=sflag, size = 0x4, offset = 0, fixed_abs, tag = 'sflag constant byte address 0x0 - dummy sync flag']
  #allocation23 [shape = 's32[]', space=sflag, size = 0x4, offset = 0, fixed_abs, tag = 'sflag constant byte address 0x0 - dummy sync flag']
  #allocation24 [shape = 's32[]', space=sflag, size = 0x4, offset = 0, fixed_abs, tag = 'sflag constant byte address 0x0 - dummy sync flag']
  #allocation25 [shape = 's32[]', space=sflag, size = 0x4, offset = 0, fixed_abs, tag = 'sflag constant byte address 0x0 - dummy sync flag']
  #allocation26 [shape = 's32[]', space=sflag, size = 0x4, offset = 0, fixed_abs, tag = 'sflag constant byte address 0x0 - dummy sync flag']
  #allocation27 [shape = 's32[]', space=sflag, size = 0x4, offset = 0, fixed_abs, tag = 'sflag constant byte address 0x0 - dummy sync flag']
  #allocation28 [shape = 's32[]', space=sflag, size = 0x4, offset = 0, fixed_abs, tag = 'sflag constant byte address 0x0 - dummy sync flag']
  #allocation29 [shape = 's32[]', space=sflag, size = 0x4, offset = 0, fixed_abs, tag = 'sflag constant byte address 0x0 - dummy sync flag']
  #allocation30 [shape = 's32[]', space=sflag, size = 0x4, offset = 0, fixed_abs, tag = 'sflag constant byte address 0x0 - dummy sync flag']
  #allocation31 [shape = 's32[]', space=sflag, size = 0x4, offset = 0, fixed_abs, tag = 'sflag constant byte address 0x0 - dummy sync flag']
  #allocation32 [shape = 's32[]', space=sflag, size = 0x4, offset = 0, fixed_abs, tag = 'sflag constant byte address 0x0 - dummy sync flag']
  #allocation33 [shape = 's32[]', space=sflag, size = 0x4, offset = 0, fixed_abs, tag = 'sflag constant byte address 0x0 - dummy sync flag']
  #allocation34 [shape = 's32[]', space=sflag, size = 0x4, offset = 0, fixed_abs, tag = 'sflag constant byte address 0x0 - dummy sync flag']
  #allocation35 [shape = 's32[]', space=sflag, size = 0x4, offset = 0, fixed_abs, tag = 'sflag constant byte address 0x0 - dummy sync flag']
  #allocation36 [shape = 's32[]', space=sflag, size = 0x4, offset = 0, fixed_abs, tag = 'sflag constant byte address 0x0 - dummy sync flag']
  #allocation37 [shape = 's32[]', space=sflag, size = 0x4, offset = 0, fixed_abs, tag = 'sflag constant byte address 0x0 - dummy sync flag']
  #allocation38 [shape = 's32[]', space=sflag, size = 0x4, offset = 0, fixed_abs, tag = 'sflag constant byte address 0x0 - dummy sync flag']
  #allocation39 [shape = 's32[]', space=sflag, size = 0x4, offset = 0, fixed_abs, tag = 'sflag constant byte address 0x0 - dummy sync flag']
  #allocation40 [shape = 's32[]', space=sflag, size = 0x4, offset = 0, fixed_abs, tag = 'sflag constant byte address 0x0 - dummy sync flag']
  #allocation41 [shape = 's32[]', space=sflag, size = 0x4, offset = 0, fixed_abs, tag = 'sflag constant byte address 0x0 - dummy sync flag']
  #allocation42 [shape = 's32[]', space=sflag, size = 0x4, offset = 0, fixed_abs, tag = 'sflag constant byte address 0x0 - dummy sync flag']
  #allocation43 [shape = 's32[]', space=sflag, size = 0x4, offset = 0, fixed_abs, tag = 'sflag constant byte address 0x0 - dummy sync flag']
  #allocation44 [shape = 's32[]', space=sflag, size = 0x4, offset = 0, fixed_abs, tag = 'sflag constant byte address 0x0 - dummy sync flag']
  #allocation45 [shape = 's32[]', space=sflag, size = 0x4, offset = 0, fixed_abs, tag = 'sflag constant byte address 0x0 - dummy sync flag']
  #allocation46 [shape = 's32[]', space=sflag, size = 0x4, offset = 0, fixed_abs, tag = 'sflag constant byte address 0x0 - dummy sync flag']
  #allocation47 [shape = 's32[]', space=sflag, size = 0x4, offset = 0, fixed_abs, tag = 'sflag constant byte address 0x0 - dummy sync flag']
  #allocation48 [shape = 's32[]', space=sflag, size = 0x4, offset = 0, fixed_abs, tag = 'sflag constant byte address 0x0 - dummy sync flag']
  #allocation49 [shape = 's32[]', space=sflag, size = 0x4, offset = 0, fixed_abs, tag = 'sflag constant byte address 0x0 - dummy sync flag']
  #allocation50 [shape = 's32[]', space=sflag, size = 0x4, offset = 0, fixed_abs, tag = 'sflag constant byte address 0x0 - dummy sync flag']
  #allocation51 [shape = 's32[]', space=sflag, size = 0x4, offset = 0, fixed_abs, tag = 'sflag constant byte address 0x0 - dummy sync flag']
  #allocation52 [shape = 's32[]', space=sflag, size = 0x4, offset = 0, fixed_abs, tag = 'sflag constant byte address 0x0 - dummy sync flag']
  #allocation53 [shape = 's32[]', space=sflag, size = 0x4, offset = 0, fixed_abs, tag = 'sflag constant byte address 0x0 - dummy sync flag']
  #allocation54 [shape = 's32[]', space=sflag, size = 0x4, offset = 0, fixed_abs, tag = 'sflag constant byte address 0x0 - dummy sync flag']
  #allocation55 [shape = 's32[]', space=sflag, size = 0x4, offset = 0, fixed_abs, tag = 'sflag constant byte address 0x0 - dummy sync flag']
  #allocation56 [shape = 's32[]', space=sflag, size = 0x4, offset = 0, fixed_abs, tag = 'sflag constant byte address 0x0 - dummy sync flag']
  %s0 = inlined_call_operand.hbm [shape: s32[8], index: 0, kind: input, shape index: {}]
  %s1 = inlined_call_operand.vmem [shape: s32[8], index: 1, kind: input, shape index: {}]
  %s2 = inlined_call_operand.vmem [shape: s32[8], index: 2, kind: input, shape index: {}]
  %s3 = inlined_call_operand.hbm [shape: f32[16,128], index: 3, kind: input, shape index: {}]
  %s4 = inlined_call_operand.vmem [shape: f32[4,128], index: 4, kind: input, shape index: {}]
  %s5 = inlined_call_operand.hbm [shape: f32[8,128], index: 5, kind: output, shape index: {0}]
  %s6 = inlined_call_operand.hbm [shape: f32[8,128], index: 6, kind: output, shape index: {1}]
  %s7 = inlined_call_operand.hbm [shape: f32[8,128], index: 7, kind: output, shape index: {2}]
  %8 = xla_tuple %s5, %s6, %s7
  %s9 = sld [smem:[#allocation0]]
  $region330: #{tpu_custom_call.1} parent=0
    _
  %s11 = ssub.s32 1, %s9
  %s12 = scalar_select 0, %s11, %s9
  %14 = dma.hbm_to_smem %s0, 16, [#allocation7], [#allocation6]
  %s15 = sshll.u32 %s1, 4
  %s16 = int_to_ptr.vmem [resolvable:$true] %s15
  %18 = dma.vmem_to_smem %s16, 16, [#allocation8], [#allocation6]
  %s19 = sshll.u32 %s2, 4
  %s20 = int_to_ptr.vmem [resolvable:$true] %s19
  %22 = dma.vmem_to_smem %s20, 16, [#allocation9], [#allocation6]
  %23 = dma.done [#allocation6], 48
  %24 = sfence
  $region1: #{tpu_custom_call.1} parent=0
    #allocation10 [shape = 'u8[4096]{0}', space=vmem, size = 0x1000, scoped, tag = 'output window, operand 0, single buffered']
    #allocation11 [shape = 's32[1]{0}', space=sflag, size = 0x4, scoped, tag = 'scoped memory for tpu_custom_call.1']
    #allocation12 [shape = 'u8[4096]{0}', space=vmem, size = 0x1000, scoped, tag = 'output window, operand 1, single buffered']
    #allocation13 [shape = 's32[1]{0}', space=sflag, size = 0x4, scoped, tag = 'scoped memory for tpu_custom_call.1']
    #allocation14 [shape = 'u8[4096]{0}', space=vmem, size = 0x1000, scoped, tag = 'output window, operand 2, single buffered']
    %25 = vsyncpa [#allocation11], 0
    %26 = vsyncpa [#allocation13], 0
    %s27 = smul.u32 0, 8
    %s28 = sld [smem:[#allocation7 + %s27]]
    %s29 = sld [smem:[#allocation8 + %s27]]
    %s30 = sld [smem:[#allocation9 + %s27]]
    %s31 = smul.addr %s28, 16
    %s32 = scalar_lea.hbm %s3, %s31
    // Predicated region
    $region2: #{tpu_custom_call.1} parent=1 // pred_check
      _
    $region3: #{tpu_custom_call.1} parent=1 // pred_check_branch
      %34 = sbr.rel target = $region5
    $region4: #{tpu_custom_call.1} parent=1 // pred_region
      %35 = sst [smem:[#allocation17]] [#allocation16]
      %36 = sst [smem:[#allocation18]] [#allocation15]
    $region5: #{tpu_custom_call.1} parent=1 // pred_fallthru
      _
    %38 = shalt.err (0)
    %s40 = sshll.u32 [#allocation2], 4
    %s41 = int_to_ptr.vmem [resolvable:$true] %s40
    %43 = dma.hbm_to_vmem [thread:$0]  %s32, 16, %s41, [#allocation5]
    %s44 = scalar_lea.vmem %s4, %s29
    %s45 = scalar_lea.sflag [#allocation5], 8
    %p47 = scmp.lt.u32.totalorder 1, 8
    %p48 = pneg %p47
    // Predicated region
    $region6: #{tpu_custom_call.1} parent=1 // pred_check
      _
    $region7: #{tpu_custom_call.1} parent=1 // pred_check_branch
      %50 = sbr.rel (%p47) target = $region9
    $region8: #{tpu_custom_call.1} parent=1 // pred_region
      %s66 = sand.u32 1, 7
      %p67 = scmp.eq.s32.totalorder %s66, 0
      %p68 = pneg %p67
      // Predicated region
      $region21: #{tpu_custom_call.1} parent=8 // pred_check
        _
      $region22: #{tpu_custom_call.1} parent=8 // pred_check_branch
        %70 = sbr.rel (%p67) target = $region24
      $region23: #{tpu_custom_call.1} parent=8 // pred_region
        %s71 = sand.u32 1, 7
        %s72 = ssub.s32 1, %s71
        %s73 = scalar_lea.vmem %s44, %s72
        %s74 = ssub.s32 1, %s71
        %s75 = scalar_lea.vmem [#allocation3], %s74
        %s76 = sshll.u32 1, %s71
        %s77 = ssub.s32 %s76, 1
        loop: start=0, step=1, limit=1
        $region25: #{tpu_custom_call.1} parent=23 // loop_pre_header
          _
        $region26: #{tpu_custom_call.1} parent=23 // loop_header
          %s79 = sphi 0, %s83
          %p80 = scmp.ge.s32.totalorder %s79, 1
          %s84 = sphi %s73, %s73
          %s85 = sphi %s75, %s75
        $region27: #{tpu_custom_call.1} parent=23 // loop_header_branch
          %82 = sbr.rel (%p80) target = $region31
        $region28: #{tpu_custom_call.1} parent=23 // loop_body
          %v86 = vld [vmem:[%s84] sm:%s77]
          %87 = vst [vmem:[%s85] sm:%s77] %v86
        $region29: #{tpu_custom_call.1} parent=23 // loop_footer
          %s83 = sadd.s32 1, %s79
        $region30: #{tpu_custom_call.1} parent=23 // loop_footer_branch
          %78 = sbr.rel target = $region26
        $region31: #{tpu_custom_call.1} parent=23 // loop_exit
          _
      $region24: #{tpu_custom_call.1} parent=8 // pred_fallthru
        _
    $region9: #{tpu_custom_call.1} parent=1 // pred_fallthru
      _
    // Predicated region
    $region10: #{tpu_custom_call.1} parent=1 // pred_check
      %p51 = pneg %p47
    $region11: #{tpu_custom_call.1} parent=1 // pred_check_branch
      %53 = sbr.rel (%p51) target = $region13
    $region12: #{tpu_custom_call.1} parent=1 // pred_region
      %s54 = sshll.u32 1, 1
      %s55 = ssub.s32 %s54, 1
      loop: start=0, step=1, limit=1
      $region14: #{tpu_custom_call.1} parent=12 // loop_pre_header
        _
      $region15: #{tpu_custom_call.1} parent=12 // loop_header
        %s57 = sphi 0, %s61
        %p58 = scmp.ge.s32.totalorder %s57, 1
        %s62 = sphi %s44, %s44
        %s63 = sphi [#allocation3], [#allocation3]
      $region16: #{tpu_custom_call.1} parent=12 // loop_header_branch
        %60 = sbr.rel (%p58) target = $region20
      $region17: #{tpu_custom_call.1} parent=12 // loop_body
        %v64 = vld [vmem:[%s62] sm:%s55]
        %65 = vst [vmem:[%s63] sm:%s55] %v64
      $region18: #{tpu_custom_call.1} parent=12 // loop_footer
        %s61 = sadd.s32 1, %s57
      $region19: #{tpu_custom_call.1} parent=12 // loop_footer_branch
        %56 = sbr.rel target = $region15
      $region20: #{tpu_custom_call.1} parent=12 // loop_exit
        _
    $region13: #{tpu_custom_call.1} parent=1 // pred_fallthru
      _
    // Predicated region
    $region32: #{tpu_custom_call.1} parent=1 // pred_check
      _
    $region33: #{tpu_custom_call.1} parent=1 // pred_check_branch
      %90 = sbr.rel (0) target = $region35
    $region34: #{tpu_custom_call.1} parent=1 // pred_region
      %91 = vsyncadd %s45, 16
    $region35: #{tpu_custom_call.1} parent=1 // pred_fallthru
      _
    %s92 = smul.addr %s30, 16
    %s93 = scalar_lea.hbm %s3, %s92
    %s94 = scalar_lea.sflag [#allocation5], 16
    // Predicated region
    $region36: #{tpu_custom_call.1} parent=1 // pred_check
      _
    $region37: #{tpu_custom_call.1} parent=1 // pred_check_branch
      %96 = sbr.rel target = $region39
    $region38: #{tpu_custom_call.1} parent=1 // pred_region
      %97 = sst [smem:[#allocation17]] [#allocation21]
      %98 = sst [smem:[#allocation18]] [#allocation20]
    $region39: #{tpu_custom_call.1} parent=1 // pred_fallthru
      _
    %100 = shalt.err (0)
    %s102 = sshll.u32 [#allocation4], 4
    %s103 = int_to_ptr.vmem [resolvable:$true] %s102
    %105 = dma.hbm_to_vmem [thread:$0]  %s93, 16, %s103, %s94
    %s106 = sadd.s32 %s27, 1
    %s107 = sld [smem:[#allocation7 + %s106]]
    %s108 = sld [smem:[#allocation8 + %s106]]
    %s109 = sld [smem:[#allocation9 + %s106]]
    %s110 = smul.addr %s107, 16
    %s111 = scalar_lea.hbm %s3, %s110
    %s112 = scalar_lea.vmem [#allocation2], 1
    %s113 = scalar_lea.sflag [#allocation5], 1
    // Predicated region
    $region40: #{tpu_custom_call.1} parent=1 // pred_check
      _
    $region41: #{tpu_custom_call.1} parent=1 // pred_check_branch
      %115 = sbr.rel target = $region43
    $region42: #{tpu_custom_call.1} parent=1 // pred_region
      %116 = sst [smem:[#allocation17]] [#allocation23]
      %117 = sst [smem:[#allocation18]] [#allocation22]
    $region43: #{tpu_custom_call.1} parent=1 // pred_fallthru
      _
    %119 = shalt.err (0)
    %s121 = sshll.u32 %s112, 4
    %s122 = int_to_ptr.vmem [resolvable:$true] %s121
    %124 = dma.hbm_to_vmem [thread:$0]  %s111, 16, %s122, %s113
    %s125 = scalar_lea.vmem %s4, %s108
    %s126 = scalar_lea.vmem [#allocation3], 1
    %s127 = scalar_lea.sflag [#allocation5], 9
    %p129 = scmp.lt.u32.totalorder 1, 8
    %p130 = pneg %p129
    // Predicated region
    $region44: #{tpu_custom_call.1} parent=1 // pred_check
      _
    $region45: #{tpu_custom_call.1} parent=1 // pred_check_branch
      %132 = sbr.rel (%p129) target = $region47
    $region46: #{tpu_custom_call.1} parent=1 // pred_region
      %s148 = sand.u32 1, 7
      %p149 = scmp.eq.s32.totalorder %s148, 0
      %p150 = pneg %p149
      // Predicated region
      $region59: #{tpu_custom_call.1} parent=46 // pred_check
        _
      $region60: #{tpu_custom_call.1} parent=46 // pred_check_branch
        %152 = sbr.rel (%p149) target = $region62
      $region61: #{tpu_custom_call.1} parent=46 // pred_region
        %s153 = sand.u32 1, 7
        %s154 = ssub.s32 1, %s153
        %s155 = scalar_lea.vmem %s125, %s154
        %s156 = ssub.s32 1, %s153
        %s157 = scalar_lea.vmem %s126, %s156 [#allocation3]
        %s158 = sshll.u32 1, %s153
        %s159 = ssub.s32 %s158, 1
        loop: start=0, step=1, limit=1
        $region63: #{tpu_custom_call.1} parent=61 // loop_pre_header
          _
        $region64: #{tpu_custom_call.1} parent=61 // loop_header
          %s161 = sphi 0, %s165
          %p162 = scmp.ge.s32.totalorder %s161, 1
          %s166 = sphi %s155, %s155
          %s167 = sphi %s157, %s157
        $region65: #{tpu_custom_call.1} parent=61 // loop_header_branch
          %164 = sbr.rel (%p162) target = $region69
        $region66: #{tpu_custom_call.1} parent=61 // loop_body
          %v168 = vld [vmem:[%s166] sm:%s159]
          %169 = vst [vmem:[%s167] sm:%s159] %v168
        $region67: #{tpu_custom_call.1} parent=61 // loop_footer
          %s165 = sadd.s32 1, %s161
        $region68: #{tpu_custom_call.1} parent=61 // loop_footer_branch
          %160 = sbr.rel target = $region64
        $region69: #{tpu_custom_call.1} parent=61 // loop_exit
          _
      $region62: #{tpu_custom_call.1} parent=46 // pred_fallthru
        _
    $region47: #{tpu_custom_call.1} parent=1 // pred_fallthru
      _
    // Predicated region
    $region48: #{tpu_custom_call.1} parent=1 // pred_check
      %p133 = pneg %p129
    $region49: #{tpu_custom_call.1} parent=1 // pred_check_branch
      %135 = sbr.rel (%p133) target = $region51
    $region50: #{tpu_custom_call.1} parent=1 // pred_region
      %s136 = sshll.u32 1, 1
      %s137 = ssub.s32 %s136, 1
      loop: start=0, step=1, limit=1
      $region52: #{tpu_custom_call.1} parent=50 // loop_pre_header
        _
      $region53: #{tpu_custom_call.1} parent=50 // loop_header
        %s139 = sphi 0, %s143
        %p140 = scmp.ge.s32.totalorder %s139, 1
        %s144 = sphi %s125, %s125
        %s145 = sphi %s126, %s126
      $region54: #{tpu_custom_call.1} parent=50 // loop_header_branch
        %142 = sbr.rel (%p140) target = $region58
      $region55: #{tpu_custom_call.1} parent=50 // loop_body
        %v146 = vld [vmem:[%s144] sm:%s137]
        %147 = vst [vmem:[%s145] sm:%s137] %v146
      $region56: #{tpu_custom_call.1} parent=50 // loop_footer
        %s143 = sadd.s32 1, %s139
      $region57: #{tpu_custom_call.1} parent=50 // loop_footer_branch
        %138 = sbr.rel target = $region53
      $region58: #{tpu_custom_call.1} parent=50 // loop_exit
        _
    $region51: #{tpu_custom_call.1} parent=1 // pred_fallthru
      _
    // Predicated region
    $region70: #{tpu_custom_call.1} parent=1 // pred_check
      _
    $region71: #{tpu_custom_call.1} parent=1 // pred_check_branch
      %172 = sbr.rel (0) target = $region73
    $region72: #{tpu_custom_call.1} parent=1 // pred_region
      %173 = vsyncadd %s127, 16
    $region73: #{tpu_custom_call.1} parent=1 // pred_fallthru
      _
    %s174 = smul.addr %s109, 16
    %s175 = scalar_lea.hbm %s3, %s174
    %s176 = scalar_lea.vmem [#allocation4], 1
    %s177 = scalar_lea.sflag [#allocation5], 17
    // Predicated region
    $region74: #{tpu_custom_call.1} parent=1 // pred_check
      _
    $region75: #{tpu_custom_call.1} parent=1 // pred_check_branch
      %179 = sbr.rel target = $region77
    $region76: #{tpu_custom_call.1} parent=1 // pred_region
      %180 = sst [smem:[#allocation17]] [#allocation26]
      %181 = sst [smem:[#allocation18]] [#allocation25]
    $region77: #{tpu_custom_call.1} parent=1 // pred_fallthru
      _
    %183 = shalt.err (0)
    %s185 = sshll.u32 %s176, 4
    %s186 = int_to_ptr.vmem [resolvable:$true] %s185
    %188 = dma.hbm_to_vmem [thread:$0]  %s175, 16, %s186, %s177
    %s189 = sadd.s32 %s27, 2
    %s190 = sld [smem:[#allocation7 + %s189]]
    %s191 = sld [smem:[#allocation8 + %s189]]
    %s192 = sld [smem:[#allocation9 + %s189]]
    %s193 = smul.addr %s190, 16
    %s194 = scalar_lea.hbm %s3, %s193
    %s195 = scalar_lea.vmem [#allocation2], 2
    %s196 = scalar_lea.sflag [#allocation5], 2
    // Predicated region
    $region78: #{tpu_custom_call.1} parent=1 // pred_check
      _
    $region79: #{tpu_custom_call.1} parent=1 // pred_check_branch
      %198 = sbr.rel target = $region81
    $region80: #{tpu_custom_call.1} parent=1 // pred_region
      %199 = sst [smem:[#allocation17]] [#allocation28]
      %200 = sst [smem:[#allocation18]] [#allocation27]
    $region81: #{tpu_custom_call.1} parent=1 // pred_fallthru
      _
    %202 = shalt.err (0)
    %s204 = sshll.u32 %s195, 4
    %s205 = int_to_ptr.vmem [resolvable:$true] %s204
    %207 = dma.hbm_to_vmem [thread:$0]  %s194, 16, %s205, %s196
    %s208 = scalar_lea.vmem %s4, %s191
    %s209 = scalar_lea.vmem [#allocation3], 2
    %s210 = scalar_lea.sflag [#allocation5], 10
    %p212 = scmp.lt.u32.totalorder 1, 8
    %p213 = pneg %p212
    // Predicated region
    $region82: #{tpu_custom_call.1} parent=1 // pred_check
      _
    $region83: #{tpu_custom_call.1} parent=1 // pred_check_branch
      %215 = sbr.rel (%p212) target = $region85
    $region84: #{tpu_custom_call.1} parent=1 // pred_region
      %s231 = sand.u32 1, 7
      %p232 = scmp.eq.s32.totalorder %s231, 0
      %p233 = pneg %p232
      // Predicated region
      $region97: #{tpu_custom_call.1} parent=84 // pred_check
        _
      $region98: #{tpu_custom_call.1} parent=84 // pred_check_branch
        %235 = sbr.rel (%p232) target = $region100
      $region99: #{tpu_custom_call.1} parent=84 // pred_region
        %s236 = sand.u32 1, 7
        %s237 = ssub.s32 1, %s236
        %s238 = scalar_lea.vmem %s208, %s237
        %s239 = ssub.s32 1, %s236
        %s240 = scalar_lea.vmem %s209, %s239 [#allocation3]
        %s241 = sshll.u32 1, %s236
        %s242 = ssub.s32 %s241, 1
        loop: start=0, step=1, limit=1
        $region101: #{tpu_custom_call.1} parent=99 // loop_pre_header
          _
        $region102: #{tpu_custom_call.1} parent=99 // loop_header
          %s244 = sphi 0, %s248
          %p245 = scmp.ge.s32.totalorder %s244, 1
          %s249 = sphi %s238, %s238
          %s250 = sphi %s240, %s240
        $region103: #{tpu_custom_call.1} parent=99 // loop_header_branch
          %247 = sbr.rel (%p245) target = $region107
        $region104: #{tpu_custom_call.1} parent=99 // loop_body
          %v251 = vld [vmem:[%s249] sm:%s242]
          %252 = vst [vmem:[%s250] sm:%s242] %v251
        $region105: #{tpu_custom_call.1} parent=99 // loop_footer
          %s248 = sadd.s32 1, %s244
        $region106: #{tpu_custom_call.1} parent=99 // loop_footer_branch
          %243 = sbr.rel target = $region102
        $region107: #{tpu_custom_call.1} parent=99 // loop_exit
          _
      $region100: #{tpu_custom_call.1} parent=84 // pred_fallthru
        _
    $region85: #{tpu_custom_call.1} parent=1 // pred_fallthru
      _
    // Predicated region
    $region86: #{tpu_custom_call.1} parent=1 // pred_check
      %p216 = pneg %p212
    $region87: #{tpu_custom_call.1} parent=1 // pred_check_branch
      %218 = sbr.rel (%p216) target = $region89
    $region88: #{tpu_custom_call.1} parent=1 // pred_region
      %s219 = sshll.u32 1, 1
      %s220 = ssub.s32 %s219, 1
      loop: start=0, step=1, limit=1
      $region90: #{tpu_custom_call.1} parent=88 // loop_pre_header
        _
      $region91: #{tpu_custom_call.1} parent=88 // loop_header
        %s222 = sphi 0, %s226
        %p223 = scmp.ge.s32.totalorder %s222, 1
        %s227 = sphi %s208, %s208
        %s228 = sphi %s209, %s209
      $region92: #{tpu_custom_call.1} parent=88 // loop_header_branch
        %225 = sbr.rel (%p223) target = $region96
      $region93: #{tpu_custom_call.1} parent=88 // loop_body
        %v229 = vld [vmem:[%s227] sm:%s220]
        %230 = vst [vmem:[%s228] sm:%s220] %v229
      $region94: #{tpu_custom_call.1} parent=88 // loop_footer
        %s226 = sadd.s32 1, %s222
      $region95: #{tpu_custom_call.1} parent=88 // loop_footer_branch
        %221 = sbr.rel target = $region91
      $region96: #{tpu_custom_call.1} parent=88 // loop_exit
        _
    $region89: #{tpu_custom_call.1} parent=1 // pred_fallthru
      _
    // Predicated region
    $region108: #{tpu_custom_call.1} parent=1 // pred_check
      _
    $region109: #{tpu_custom_call.1} parent=1 // pred_check_branch
      %255 = sbr.rel (0) target = $region111
    $region110: #{tpu_custom_call.1} parent=1 // pred_region
      %256 = vsyncadd %s210, 16
    $region111: #{tpu_custom_call.1} parent=1 // pred_fallthru
      _
    %s257 = smul.addr %s192, 16
    %s258 = scalar_lea.hbm %s3, %s257
    %s259 = scalar_lea.vmem [#allocation4], 2
    %s260 = scalar_lea.sflag [#allocation5], 18
    // Predicated region
    $region112: #{tpu_custom_call.1} parent=1 // pred_check
      _
    $region113: #{tpu_custom_call.1} parent=1 // pred_check_branch
      %262 = sbr.rel target = $region115
    $region114: #{tpu_custom_call.1} parent=1 // pred_region
      %263 = sst [smem:[#allocation17]] [#allocation31]
      %264 = sst [smem:[#allocation18]] [#allocation30]
    $region115: #{tpu_custom_call.1} parent=1 // pred_fallthru
      _
    %266 = shalt.err (0)
    %s268 = sshll.u32 %s259, 4
    %s269 = int_to_ptr.vmem [resolvable:$true] %s268
    %271 = dma.hbm_to_vmem [thread:$0]  %s258, 16, %s269, %s260
    %s272 = sadd.s32 %s27, 3
    %s273 = sld [smem:[#allocation7 + %s272]]
    %s274 = sld [smem:[#allocation8 + %s272]]
    %s275 = sld [smem:[#allocation9 + %s272]]
    %s276 = smul.addr %s273, 16
    %s277 = scalar_lea.hbm %s3, %s276
    %s278 = scalar_lea.vmem [#allocation2], 3
    %s279 = scalar_lea.sflag [#allocation5], 3
    // Predicated region
    $region116: #{tpu_custom_call.1} parent=1 // pred_check
      _
    $region117: #{tpu_custom_call.1} parent=1 // pred_check_branch
      %281 = sbr.rel target = $region119
    $region118: #{tpu_custom_call.1} parent=1 // pred_region
      %282 = sst [smem:[#allocation17]] [#allocation33]
      %283 = sst [smem:[#allocation18]] [#allocation32]
    $region119: #{tpu_custom_call.1} parent=1 // pred_fallthru
      _
    %285 = shalt.err (0)
    %s287 = sshll.u32 %s278, 4
    %s288 = int_to_ptr.vmem [resolvable:$true] %s287
    %290 = dma.hbm_to_vmem [thread:$0]  %s277, 16, %s288, %s279
    %s291 = scalar_lea.vmem %s4, %s274
    %s292 = scalar_lea.vmem [#allocation3], 3
    %s293 = scalar_lea.sflag [#allocation5], 11
    %p295 = scmp.lt.u32.totalorder 1, 8
    %p296 = pneg %p295
    // Predicated region
    $region120: #{tpu_custom_call.1} parent=1 // pred_check
      _
    $region121: #{tpu_custom_call.1} parent=1 // pred_check_branch
      %298 = sbr.rel (%p295) target = $region123
    $region122: #{tpu_custom_call.1} parent=1 // pred_region
      %s314 = sand.u32 1, 7
      %p315 = scmp.eq.s32.totalorder %s314, 0
      %p316 = pneg %p315
      // Predicated region
      $region135: #{tpu_custom_call.1} parent=122 // pred_check
        _
      $region136: #{tpu_custom_call.1} parent=122 // pred_check_branch
        %318 = sbr.rel (%p315) target = $region138
      $region137: #{tpu_custom_call.1} parent=122 // pred_region
        %s319 = sand.u32 1, 7
        %s320 = ssub.s32 1, %s319
        %s321 = scalar_lea.vmem %s291, %s320
        %s322 = ssub.s32 1, %s319
        %s323 = scalar_lea.vmem %s292, %s322 [#allocation3]
        %s324 = sshll.u32 1, %s319
        %s325 = ssub.s32 %s324, 1
        loop: start=0, step=1, limit=1
        $region139: #{tpu_custom_call.1} parent=137 // loop_pre_header
          _
        $region140: #{tpu_custom_call.1} parent=137 // loop_header
          %s327 = sphi 0, %s331
          %p328 = scmp.ge.s32.totalorder %s327, 1
          %s332 = sphi %s321, %s321
          %s333 = sphi %s323, %s323
        $region141: #{tpu_custom_call.1} parent=137 // loop_header_branch
          %330 = sbr.rel (%p328) target = $region145
        $region142: #{tpu_custom_call.1} parent=137 // loop_body
          %v334 = vld [vmem:[%s332] sm:%s325]
          %335 = vst [vmem:[%s333] sm:%s325] %v334
        $region143: #{tpu_custom_call.1} parent=137 // loop_footer
          %s331 = sadd.s32 1, %s327
        $region144: #{tpu_custom_call.1} parent=137 // loop_footer_branch
          %326 = sbr.rel target = $region140
        $region145: #{tpu_custom_call.1} parent=137 // loop_exit
          _
      $region138: #{tpu_custom_call.1} parent=122 // pred_fallthru
        _
    $region123: #{tpu_custom_call.1} parent=1 // pred_fallthru
      _
    // Predicated region
    $region124: #{tpu_custom_call.1} parent=1 // pred_check
      %p299 = pneg %p295
    $region125: #{tpu_custom_call.1} parent=1 // pred_check_branch
      %301 = sbr.rel (%p299) target = $region127
    $region126: #{tpu_custom_call.1} parent=1 // pred_region
      %s302 = sshll.u32 1, 1
      %s303 = ssub.s32 %s302, 1
      loop: start=0, step=1, limit=1
      $region128: #{tpu_custom_call.1} parent=126 // loop_pre_header
        _
      $region129: #{tpu_custom_call.1} parent=126 // loop_header
        %s305 = sphi 0, %s309
        %p306 = scmp.ge.s32.totalorder %s305, 1
        %s310 = sphi %s291, %s291
        %s311 = sphi %s292, %s292
      $region130: #{tpu_custom_call.1} parent=126 // loop_header_branch
        %308 = sbr.rel (%p306) target = $region134
      $region131: #{tpu_custom_call.1} parent=126 // loop_body
        %v312 = vld [vmem:[%s310] sm:%s303]
        %313 = vst [vmem:[%s311] sm:%s303] %v312
      $region132: #{tpu_custom_call.1} parent=126 // loop_footer
        %s309 = sadd.s32 1, %s305
      $region133: #{tpu_custom_call.1} parent=126 // loop_footer_branch
        %304 = sbr.rel target = $region129
      $region134: #{tpu_custom_call.1} parent=126 // loop_exit
        _
    $region127: #{tpu_custom_call.1} parent=1 // pred_fallthru
      _
    // Predicated region
    $region146: #{tpu_custom_call.1} parent=1 // pred_check
      _
    $region147: #{tpu_custom_call.1} parent=1 // pred_check_branch
      %338 = sbr.rel (0) target = $region149
    $region148: #{tpu_custom_call.1} parent=1 // pred_region
      %339 = vsyncadd %s293, 16
    $region149: #{tpu_custom_call.1} parent=1 // pred_fallthru
      _
    %s340 = smul.addr %s275, 16
    %s341 = scalar_lea.hbm %s3, %s340
    %s342 = scalar_lea.vmem [#allocation4], 3
    %s343 = scalar_lea.sflag [#allocation5], 19
    // Predicated region
    $region150: #{tpu_custom_call.1} parent=1 // pred_check
      _
    $region151: #{tpu_custom_call.1} parent=1 // pred_check_branch
      %345 = sbr.rel target = $region153
    $region152: #{tpu_custom_call.1} parent=1 // pred_region
      %346 = sst [smem:[#allocation17]] [#allocation36]
      %347 = sst [smem:[#allocation18]] [#allocation35]
    $region153: #{tpu_custom_call.1} parent=1 // pred_fallthru
      _
    %349 = shalt.err (0)
    %s351 = sshll.u32 %s342, 4
    %s352 = int_to_ptr.vmem [resolvable:$true] %s351
    %354 = dma.hbm_to_vmem [thread:$0]  %s341, 16, %s352, %s343
    %s355 = sadd.s32 %s27, 4
    %s356 = sld [smem:[#allocation7 + %s355]]
    %s357 = sld [smem:[#allocation8 + %s355]]
    %s358 = sld [smem:[#allocation9 + %s355]]
    %s359 = smul.addr %s356, 16
    %s360 = scalar_lea.hbm %s3, %s359
    %s361 = scalar_lea.vmem [#allocation2], 4
    %s362 = scalar_lea.sflag [#allocation5], 4
    // Predicated region
    $region154: #{tpu_custom_call.1} parent=1 // pred_check
      _
    $region155: #{tpu_custom_call.1} parent=1 // pred_check_branch
      %364 = sbr.rel target = $region157
    $region156: #{tpu_custom_call.1} parent=1 // pred_region
      %365 = sst [smem:[#allocation17]] [#allocation38]
      %366 = sst [smem:[#allocation18]] [#allocation37]
    $region157: #{tpu_custom_call.1} parent=1 // pred_fallthru
      _
    %368 = shalt.err (0)
    %s370 = sshll.u32 %s361, 4
    %s371 = int_to_ptr.vmem [resolvable:$true] %s370
    %373 = dma.hbm_to_vmem [thread:$0]  %s360, 16, %s371, %s362
    %s374 = scalar_lea.vmem %s4, %s357
    %s375 = scalar_lea.vmem [#allocation3], 4
    %s376 = scalar_lea.sflag [#allocation5], 12
    %p378 = scmp.lt.u32.totalorder 1, 8
    %p379 = pneg %p378
    // Predicated region
    $region158: #{tpu_custom_call.1} parent=1 // pred_check
      _
    $region159: #{tpu_custom_call.1} parent=1 // pred_check_branch
      %381 = sbr.rel (%p378) target = $region161
    $region160: #{tpu_custom_call.1} parent=1 // pred_region
      %s397 = sand.u32 1, 7
      %p398 = scmp.eq.s32.totalorder %s397, 0
      %p399 = pneg %p398
      // Predicated region
      $region173: #{tpu_custom_call.1} parent=160 // pred_check
        _
      $region174: #{tpu_custom_call.1} parent=160 // pred_check_branch
        %401 = sbr.rel (%p398) target = $region176
      $region175: #{tpu_custom_call.1} parent=160 // pred_region
        %s402 = sand.u32 1, 7
        %s403 = ssub.s32 1, %s402
        %s404 = scalar_lea.vmem %s374, %s403
        %s405 = ssub.s32 1, %s402
        %s406 = scalar_lea.vmem %s375, %s405 [#allocation3]
        %s407 = sshll.u32 1, %s402
        %s408 = ssub.s32 %s407, 1
        loop: start=0, step=1, limit=1
        $region177: #{tpu_custom_call.1} parent=175 // loop_pre_header
          _
        $region178: #{tpu_custom_call.1} parent=175 // loop_header
          %s410 = sphi 0, %s414
          %p411 = scmp.ge.s32.totalorder %s410, 1
          %s415 = sphi %s404, %s404
          %s416 = sphi %s406, %s406
        $region179: #{tpu_custom_call.1} parent=175 // loop_header_branch
          %413 = sbr.rel (%p411) target = $region183
        $region180: #{tpu_custom_call.1} parent=175 // loop_body
          %v417 = vld [vmem:[%s415] sm:%s408]
          %418 = vst [vmem:[%s416] sm:%s408] %v417
        $region181: #{tpu_custom_call.1} parent=175 // loop_footer
          %s414 = sadd.s32 1, %s410
        $region182: #{tpu_custom_call.1} parent=175 // loop_footer_branch
          %409 = sbr.rel target = $region178
        $region183: #{tpu_custom_call.1} parent=175 // loop_exit
          _
      $region176: #{tpu_custom_call.1} parent=160 // pred_fallthru
        _
    $region161: #{tpu_custom_call.1} parent=1 // pred_fallthru
      _
    // Predicated region
    $region162: #{tpu_custom_call.1} parent=1 // pred_check
      %p382 = pneg %p378
    $region163: #{tpu_custom_call.1} parent=1 // pred_check_branch
      %384 = sbr.rel (%p382) target = $region165
    $region164: #{tpu_custom_call.1} parent=1 // pred_region
      %s385 = sshll.u32 1, 1
      %s386 = ssub.s32 %s385, 1
      loop: start=0, step=1, limit=1
      $region166: #{tpu_custom_call.1} parent=164 // loop_pre_header
        _
      $region167: #{tpu_custom_call.1} parent=164 // loop_header
        %s388 = sphi 0, %s392
        %p389 = scmp.ge.s32.totalorder %s388, 1
        %s393 = sphi %s374, %s374
        %s394 = sphi %s375, %s375
      $region168: #{tpu_custom_call.1} parent=164 // loop_header_branch
        %391 = sbr.rel (%p389) target = $region172
      $region169: #{tpu_custom_call.1} parent=164 // loop_body
        %v395 = vld [vmem:[%s393] sm:%s386]
        %396 = vst [vmem:[%s394] sm:%s386] %v395
      $region170: #{tpu_custom_call.1} parent=164 // loop_footer
        %s392 = sadd.s32 1, %s388
      $region171: #{tpu_custom_call.1} parent=164 // loop_footer_branch
        %387 = sbr.rel target = $region167
      $region172: #{tpu_custom_call.1} parent=164 // loop_exit
        _
    $region165: #{tpu_custom_call.1} parent=1 // pred_fallthru
      _
    // Predicated region
    $region184: #{tpu_custom_call.1} parent=1 // pred_check
      _
    $region185: #{tpu_custom_call.1} parent=1 // pred_check_branch
      %421 = sbr.rel (0) target = $region187
    $region186: #{tpu_custom_call.1} parent=1 // pred_region
      %422 = vsyncadd %s376, 16
    $region187: #{tpu_custom_call.1} parent=1 // pred_fallthru
      _
    %s423 = smul.addr %s358, 16
    %s424 = scalar_lea.hbm %s3, %s423
    %s425 = scalar_lea.vmem [#allocation4], 4
    %s426 = scalar_lea.sflag [#allocation5], 20
    // Predicated region
    $region188: #{tpu_custom_call.1} parent=1 // pred_check
      _
    $region189: #{tpu_custom_call.1} parent=1 // pred_check_branch
      %428 = sbr.rel target = $region191
    $region190: #{tpu_custom_call.1} parent=1 // pred_region
      %429 = sst [smem:[#allocation17]] [#allocation41]
      %430 = sst [smem:[#allocation18]] [#allocation40]
    $region191: #{tpu_custom_call.1} parent=1 // pred_fallthru
      _
    %432 = shalt.err (0)
    %s434 = sshll.u32 %s425, 4
    %s435 = int_to_ptr.vmem [resolvable:$true] %s434
    %437 = dma.hbm_to_vmem [thread:$0]  %s424, 16, %s435, %s426
    %s438 = sadd.s32 %s27, 5
    %s439 = sld [smem:[#allocation7 + %s438]]
    %s440 = sld [smem:[#allocation8 + %s438]]
    %s441 = sld [smem:[#allocation9 + %s438]]
    %s442 = smul.addr %s439, 16
    %s443 = scalar_lea.hbm %s3, %s442
    %s444 = scalar_lea.vmem [#allocation2], 5
    %s445 = scalar_lea.sflag [#allocation5], 5
    // Predicated region
    $region192: #{tpu_custom_call.1} parent=1 // pred_check
      _
    $region193: #{tpu_custom_call.1} parent=1 // pred_check_branch
      %447 = sbr.rel target = $region195
    $region194: #{tpu_custom_call.1} parent=1 // pred_region
      %448 = sst [smem:[#allocation17]] [#allocation43]
      %449 = sst [smem:[#allocation18]] [#allocation42]
    $region195: #{tpu_custom_call.1} parent=1 // pred_fallthru
      _
    %451 = shalt.err (0)
    %s453 = sshll.u32 %s444, 4
    %s454 = int_to_ptr.vmem [resolvable:$true] %s453
    %456 = dma.hbm_to_vmem [thread:$0]  %s443, 16, %s454, %s445
    %s457 = scalar_lea.vmem %s4, %s440
    %s458 = scalar_lea.vmem [#allocation3], 5
    %s459 = scalar_lea.sflag [#allocation5], 13
    %p461 = scmp.lt.u32.totalorder 1, 8
    %p462 = pneg %p461
    // Predicated region
    $region196: #{tpu_custom_call.1} parent=1 // pred_check
      _
    $region197: #{tpu_custom_call.1} parent=1 // pred_check_branch
      %464 = sbr.rel (%p461) target = $region199
    $region198: #{tpu_custom_call.1} parent=1 // pred_region
      %s480 = sand.u32 1, 7
      %p481 = scmp.eq.s32.totalorder %s480, 0
      %p482 = pneg %p481
      // Predicated region
      $region211: #{tpu_custom_call.1} parent=198 // pred_check
        _
      $region212: #{tpu_custom_call.1} parent=198 // pred_check_branch
        %484 = sbr.rel (%p481) target = $region214
      $region213: #{tpu_custom_call.1} parent=198 // pred_region
        %s485 = sand.u32 1, 7
        %s486 = ssub.s32 1, %s485
        %s487 = scalar_lea.vmem %s457, %s486
        %s488 = ssub.s32 1, %s485
        %s489 = scalar_lea.vmem %s458, %s488 [#allocation3]
        %s490 = sshll.u32 1, %s485
        %s491 = ssub.s32 %s490, 1
        loop: start=0, step=1, limit=1
        $region215: #{tpu_custom_call.1} parent=213 // loop_pre_header
          _
        $region216: #{tpu_custom_call.1} parent=213 // loop_header
          %s493 = sphi 0, %s497
          %p494 = scmp.ge.s32.totalorder %s493, 1
          %s498 = sphi %s487, %s487
          %s499 = sphi %s489, %s489
        $region217: #{tpu_custom_call.1} parent=213 // loop_header_branch
          %496 = sbr.rel (%p494) target = $region221
        $region218: #{tpu_custom_call.1} parent=213 // loop_body
          %v500 = vld [vmem:[%s498] sm:%s491]
          %501 = vst [vmem:[%s499] sm:%s491] %v500
        $region219: #{tpu_custom_call.1} parent=213 // loop_footer
          %s497 = sadd.s32 1, %s493
        $region220: #{tpu_custom_call.1} parent=213 // loop_footer_branch
          %492 = sbr.rel target = $region216
        $region221: #{tpu_custom_call.1} parent=213 // loop_exit
          _
      $region214: #{tpu_custom_call.1} parent=198 // pred_fallthru
        _
    $region199: #{tpu_custom_call.1} parent=1 // pred_fallthru
      _
    // Predicated region
    $region200: #{tpu_custom_call.1} parent=1 // pred_check
      %p465 = pneg %p461
    $region201: #{tpu_custom_call.1} parent=1 // pred_check_branch
      %467 = sbr.rel (%p465) target = $region203
    $region202: #{tpu_custom_call.1} parent=1 // pred_region
      %s468 = sshll.u32 1, 1
      %s469 = ssub.s32 %s468, 1
      loop: start=0, step=1, limit=1
      $region204: #{tpu_custom_call.1} parent=202 // loop_pre_header
        _
      $region205: #{tpu_custom_call.1} parent=202 // loop_header
        %s471 = sphi 0, %s475
        %p472 = scmp.ge.s32.totalorder %s471, 1
        %s476 = sphi %s457, %s457
        %s477 = sphi %s458, %s458
      $region206: #{tpu_custom_call.1} parent=202 // loop_header_branch
        %474 = sbr.rel (%p472) target = $region210
      $region207: #{tpu_custom_call.1} parent=202 // loop_body
        %v478 = vld [vmem:[%s476] sm:%s469]
        %479 = vst [vmem:[%s477] sm:%s469] %v478
      $region208: #{tpu_custom_call.1} parent=202 // loop_footer
        %s475 = sadd.s32 1, %s471
      $region209: #{tpu_custom_call.1} parent=202 // loop_footer_branch
        %470 = sbr.rel target = $region205
      $region210: #{tpu_custom_call.1} parent=202 // loop_exit
        _
    $region203: #{tpu_custom_call.1} parent=1 // pred_fallthru
      _
    // Predicated region
    $region222: #{tpu_custom_call.1} parent=1 // pred_check
      _
    $region223: #{tpu_custom_call.1} parent=1 // pred_check_branch
      %504 = sbr.rel (0) target = $region225
    $region224: #{tpu_custom_call.1} parent=1 // pred_region
      %505 = vsyncadd %s459, 16
    $region225: #{tpu_custom_call.1} parent=1 // pred_fallthru
      _
    %s506 = smul.addr %s441, 16
    %s507 = scalar_lea.hbm %s3, %s506
    %s508 = scalar_lea.vmem [#allocation4], 5
    %s509 = scalar_lea.sflag [#allocation5], 21
    // Predicated region
    $region226: #{tpu_custom_call.1} parent=1 // pred_check
      _
    $region227: #{tpu_custom_call.1} parent=1 // pred_check_branch
      %511 = sbr.rel target = $region229
    $region228: #{tpu_custom_call.1} parent=1 // pred_region
      %512 = sst [smem:[#allocation17]] [#allocation46]
      %513 = sst [smem:[#allocation18]] [#allocation45]
    $region229: #{tpu_custom_call.1} parent=1 // pred_fallthru
      _
    %515 = shalt.err (0)
    %s517 = sshll.u32 %s508, 4
    %s518 = int_to_ptr.vmem [resolvable:$true] %s517
    %520 = dma.hbm_to_vmem [thread:$0]  %s507, 16, %s518, %s509
    %s521 = sadd.s32 %s27, 6
    %s522 = sld [smem:[#allocation7 + %s521]]
    %s523 = sld [smem:[#allocation8 + %s521]]
    %s524 = sld [smem:[#allocation9 + %s521]]
    %s525 = smul.addr %s522, 16
    %s526 = scalar_lea.hbm %s3, %s525
    %s527 = scalar_lea.vmem [#allocation2], 6
    %s528 = scalar_lea.sflag [#allocation5], 6
    // Predicated region
    $region230: #{tpu_custom_call.1} parent=1 // pred_check
      _
    $region231: #{tpu_custom_call.1} parent=1 // pred_check_branch
      %530 = sbr.rel target = $region233
    $region232: #{tpu_custom_call.1} parent=1 // pred_region
      %531 = sst [smem:[#allocation17]] [#allocation48]
      %532 = sst [smem:[#allocation18]] [#allocation47]
    $region233: #{tpu_custom_call.1} parent=1 // pred_fallthru
      _
    %534 = shalt.err (0)
    %s536 = sshll.u32 %s527, 4
    %s537 = int_to_ptr.vmem [resolvable:$true] %s536
    %539 = dma.hbm_to_vmem [thread:$0]  %s526, 16, %s537, %s528
    %s540 = scalar_lea.vmem %s4, %s523
    %s541 = scalar_lea.vmem [#allocation3], 6
    %s542 = scalar_lea.sflag [#allocation5], 14
    %p544 = scmp.lt.u32.totalorder 1, 8
    %p545 = pneg %p544
    // Predicated region
    $region234: #{tpu_custom_call.1} parent=1 // pred_check
      _
    $region235: #{tpu_custom_call.1} parent=1 // pred_check_branch
      %547 = sbr.rel (%p544) target = $region237
    $region236: #{tpu_custom_call.1} parent=1 // pred_region
      %s563 = sand.u32 1, 7
      %p564 = scmp.eq.s32.totalorder %s563, 0
      %p565 = pneg %p564
      // Predicated region
      $region249: #{tpu_custom_call.1} parent=236 // pred_check
        _
      $region250: #{tpu_custom_call.1} parent=236 // pred_check_branch
        %567 = sbr.rel (%p564) target = $region252
      $region251: #{tpu_custom_call.1} parent=236 // pred_region
        %s568 = sand.u32 1, 7
        %s569 = ssub.s32 1, %s568
        %s570 = scalar_lea.vmem %s540, %s569
        %s571 = ssub.s32 1, %s568
        %s572 = scalar_lea.vmem %s541, %s571 [#allocation3]
        %s573 = sshll.u32 1, %s568
        %s574 = ssub.s32 %s573, 1
        loop: start=0, step=1, limit=1
        $region253: #{tpu_custom_call.1} parent=251 // loop_pre_header
          _
        $region254: #{tpu_custom_call.1} parent=251 // loop_header
          %s576 = sphi 0, %s580
          %p577 = scmp.ge.s32.totalorder %s576, 1
          %s581 = sphi %s570, %s570
          %s582 = sphi %s572, %s572
        $region255: #{tpu_custom_call.1} parent=251 // loop_header_branch
          %579 = sbr.rel (%p577) target = $region259
        $region256: #{tpu_custom_call.1} parent=251 // loop_body
          %v583 = vld [vmem:[%s581] sm:%s574]
          %584 = vst [vmem:[%s582] sm:%s574] %v583
        $region257: #{tpu_custom_call.1} parent=251 // loop_footer
          %s580 = sadd.s32 1, %s576
        $region258: #{tpu_custom_call.1} parent=251 // loop_footer_branch
          %575 = sbr.rel target = $region254
        $region259: #{tpu_custom_call.1} parent=251 // loop_exit
          _
      $region252: #{tpu_custom_call.1} parent=236 // pred_fallthru
        _
    $region237: #{tpu_custom_call.1} parent=1 // pred_fallthru
      _
    // Predicated region
    $region238: #{tpu_custom_call.1} parent=1 // pred_check
      %p548 = pneg %p544
    $region239: #{tpu_custom_call.1} parent=1 // pred_check_branch
      %550 = sbr.rel (%p548) target = $region241
    $region240: #{tpu_custom_call.1} parent=1 // pred_region
      %s551 = sshll.u32 1, 1
      %s552 = ssub.s32 %s551, 1
      loop: start=0, step=1, limit=1
      $region242: #{tpu_custom_call.1} parent=240 // loop_pre_header
        _
      $region243: #{tpu_custom_call.1} parent=240 // loop_header
        %s554 = sphi 0, %s558
        %p555 = scmp.ge.s32.totalorder %s554, 1
        %s559 = sphi %s540, %s540
        %s560 = sphi %s541, %s541
      $region244: #{tpu_custom_call.1} parent=240 // loop_header_branch
        %557 = sbr.rel (%p555) target = $region248
      $region245: #{tpu_custom_call.1} parent=240 // loop_body
        %v561 = vld [vmem:[%s559] sm:%s552]
        %562 = vst [vmem:[%s560] sm:%s552] %v561
      $region246: #{tpu_custom_call.1} parent=240 // loop_footer
        %s558 = sadd.s32 1, %s554
      $region247: #{tpu_custom_call.1} parent=240 // loop_footer_branch
        %553 = sbr.rel target = $region243
      $region248: #{tpu_custom_call.1} parent=240 // loop_exit
        _
    $region241: #{tpu_custom_call.1} parent=1 // pred_fallthru
      _
    // Predicated region
    $region260: #{tpu_custom_call.1} parent=1 // pred_check
      _
    $region261: #{tpu_custom_call.1} parent=1 // pred_check_branch
      %587 = sbr.rel (0) target = $region263
    $region262: #{tpu_custom_call.1} parent=1 // pred_region
      %588 = vsyncadd %s542, 16
    $region263: #{tpu_custom_call.1} parent=1 // pred_fallthru
      _
    %s589 = smul.addr %s524, 16
    %s590 = scalar_lea.hbm %s3, %s589
    %s591 = scalar_lea.vmem [#allocation4], 6
    %s592 = scalar_lea.sflag [#allocation5], 22
    // Predicated region
    $region264: #{tpu_custom_call.1} parent=1 // pred_check
      _
    $region265: #{tpu_custom_call.1} parent=1 // pred_check_branch
      %594 = sbr.rel target = $region267
    $region266: #{tpu_custom_call.1} parent=1 // pred_region
      %595 = sst [smem:[#allocation17]] [#allocation51]
      %596 = sst [smem:[#allocation18]] [#allocation50]
    $region267: #{tpu_custom_call.1} parent=1 // pred_fallthru
      _
    %598 = shalt.err (0)
    %s600 = sshll.u32 %s591, 4
    %s601 = int_to_ptr.vmem [resolvable:$true] %s600
    %603 = dma.hbm_to_vmem [thread:$0]  %s590, 16, %s601, %s592
    %s604 = sadd.s32 %s27, 7
    %s605 = sld [smem:[#allocation7 + %s604]]
    %s606 = sld [smem:[#allocation8 + %s604]]
    %s607 = sld [smem:[#allocation9 + %s604]]
    %s608 = smul.addr %s605, 16
    %s609 = scalar_lea.hbm %s3, %s608
    %s610 = scalar_lea.vmem [#allocation2], 7
    %s611 = scalar_lea.sflag [#allocation5], 7
    // Predicated region
    $region268: #{tpu_custom_call.1} parent=1 // pred_check
      _
    $region269: #{tpu_custom_call.1} parent=1 // pred_check_branch
      %613 = sbr.rel target = $region271
    $region270: #{tpu_custom_call.1} parent=1 // pred_region
      %614 = sst [smem:[#allocation17]] [#allocation53]
      %615 = sst [smem:[#allocation18]] [#allocation52]
    $region271: #{tpu_custom_call.1} parent=1 // pred_fallthru
      _
    %617 = shalt.err (0)
    %s619 = sshll.u32 %s610, 4
    %s620 = int_to_ptr.vmem [resolvable:$true] %s619
    %622 = dma.hbm_to_vmem [thread:$0]  %s609, 16, %s620, %s611
    %s623 = scalar_lea.vmem %s4, %s606
    %s624 = scalar_lea.vmem [#allocation3], 7
    %s625 = scalar_lea.sflag [#allocation5], 15
    %p627 = scmp.lt.u32.totalorder 1, 8
    %p628 = pneg %p627
    // Predicated region
    $region272: #{tpu_custom_call.1} parent=1 // pred_check
      _
    $region273: #{tpu_custom_call.1} parent=1 // pred_check_branch
      %630 = sbr.rel (%p627) target = $region275
    $region274: #{tpu_custom_call.1} parent=1 // pred_region
      %s646 = sand.u32 1, 7
      %p647 = scmp.eq.s32.totalorder %s646, 0
      %p648 = pneg %p647
      // Predicated region
      $region287: #{tpu_custom_call.1} parent=274 // pred_check
        _
      $region288: #{tpu_custom_call.1} parent=274 // pred_check_branch
        %650 = sbr.rel (%p647) target = $region290
      $region289: #{tpu_custom_call.1} parent=274 // pred_region
        %s651 = sand.u32 1, 7
        %s652 = ssub.s32 1, %s651
        %s653 = scalar_lea.vmem %s623, %s652
        %s654 = ssub.s32 1, %s651
        %s655 = scalar_lea.vmem %s624, %s654 [#allocation3]
        %s656 = sshll.u32 1, %s651
        %s657 = ssub.s32 %s656, 1
        loop: start=0, step=1, limit=1
        $region291: #{tpu_custom_call.1} parent=289 // loop_pre_header
          _
        $region292: #{tpu_custom_call.1} parent=289 // loop_header
          %s659 = sphi 0, %s663
          %p660 = scmp.ge.s32.totalorder %s659, 1
          %s664 = sphi %s653, %s653
          %s665 = sphi %s655, %s655
        $region293: #{tpu_custom_call.1} parent=289 // loop_header_branch
          %662 = sbr.rel (%p660) target = $region297
        $region294: #{tpu_custom_call.1} parent=289 // loop_body
          %v666 = vld [vmem:[%s664] sm:%s657]
          %667 = vst [vmem:[%s665] sm:%s657] %v666
        $region295: #{tpu_custom_call.1} parent=289 // loop_footer
          %s663 = sadd.s32 1, %s659
        $region296: #{tpu_custom_call.1} parent=289 // loop_footer_branch
          %658 = sbr.rel target = $region292
        $region297: #{tpu_custom_call.1} parent=289 // loop_exit
          _
      $region290: #{tpu_custom_call.1} parent=274 // pred_fallthru
        _
    $region275: #{tpu_custom_call.1} parent=1 // pred_fallthru
      _
    // Predicated region
    $region276: #{tpu_custom_call.1} parent=1 // pred_check
      %p631 = pneg %p627
    $region277: #{tpu_custom_call.1} parent=1 // pred_check_branch
      %633 = sbr.rel (%p631) target = $region279
    $region278: #{tpu_custom_call.1} parent=1 // pred_region
      %s634 = sshll.u32 1, 1
      %s635 = ssub.s32 %s634, 1
      loop: start=0, step=1, limit=1
      $region280: #{tpu_custom_call.1} parent=278 // loop_pre_header
        _
      $region281: #{tpu_custom_call.1} parent=278 // loop_header
        %s637 = sphi 0, %s641
        %p638 = scmp.ge.s32.totalorder %s637, 1
        %s642 = sphi %s623, %s623
        %s643 = sphi %s624, %s624
      $region282: #{tpu_custom_call.1} parent=278 // loop_header_branch
        %640 = sbr.rel (%p638) target = $region286
      $region283: #{tpu_custom_call.1} parent=278 // loop_body
        %v644 = vld [vmem:[%s642] sm:%s635]
        %645 = vst [vmem:[%s643] sm:%s635] %v644
      $region284: #{tpu_custom_call.1} parent=278 // loop_footer
        %s641 = sadd.s32 1, %s637
      $region285: #{tpu_custom_call.1} parent=278 // loop_footer_branch
        %636 = sbr.rel target = $region281
      $region286: #{tpu_custom_call.1} parent=278 // loop_exit
        _
    $region279: #{tpu_custom_call.1} parent=1 // pred_fallthru
      _
    // Predicated region
    $region298: #{tpu_custom_call.1} parent=1 // pred_check
      _
    $region299: #{tpu_custom_call.1} parent=1 // pred_check_branch
      %670 = sbr.rel (0) target = $region301
    $region300: #{tpu_custom_call.1} parent=1 // pred_region
      %671 = vsyncadd %s625, 16
    $region301: #{tpu_custom_call.1} parent=1 // pred_fallthru
      _
    %s672 = smul.addr %s607, 16
    %s673 = scalar_lea.hbm %s3, %s672
    %s674 = scalar_lea.vmem [#allocation4], 7
    %s675 = scalar_lea.sflag [#allocation5], 23
    // Predicated region
    $region302: #{tpu_custom_call.1} parent=1 // pred_check
      _
    $region303: #{tpu_custom_call.1} parent=1 // pred_check_branch
      %677 = sbr.rel target = $region305
    $region304: #{tpu_custom_call.1} parent=1 // pred_region
      %678 = sst [smem:[#allocation17]] [#allocation56]
      %679 = sst [smem:[#allocation18]] [#allocation55]
    $region305: #{tpu_custom_call.1} parent=1 // pred_fallthru
      _
    %681 = shalt.err (0)
    %s683 = sshll.u32 %s674, 4
    %s684 = int_to_ptr.vmem [resolvable:$true] %s683
    %686 = dma.hbm_to_vmem [thread:$0]  %s673, 16, %s684, %s675
    %688 = dma.done [#allocation5], 16
    %690 = dma.done %s45, 16
    %692 = dma.done %s94, 16
    %694 = dma.done %s113, 16
    %696 = dma.done %s127, 16
    %698 = dma.done %s177, 16
    %700 = dma.done %s196, 16
    %702 = dma.done %s210, 16
    %704 = dma.done %s260, 16
    %706 = dma.done %s279, 16
    %708 = dma.done %s293, 16
    %710 = dma.done %s343, 16
    %712 = dma.done %s362, 16
    %714 = dma.done %s376, 16
    %716 = dma.done %s426, 16
    %718 = dma.done %s445, 16
    %720 = dma.done %s459, 16
    %722 = dma.done %s509, 16
    %724 = dma.done %s528, 16
    %726 = dma.done %s542, 16
    %728 = dma.done %s592, 16
    %730 = dma.done %s611, 16
    %732 = dma.done %s625, 16
    %734 = dma.done %s675, 16
    %v735 = vld [vmem:[#allocation2] sm:$0xff]
    %736 = vst [vmem:[#allocation10] sm:$0xff] %v735
    %v737 = vld [vmem:[#allocation3] sm:$0xff]
    %738 = vst [vmem:[#allocation12] sm:$0xff] %v737
    %v739 = vld [vmem:[#allocation4] sm:$0xff]
    %740 = vst [vmem:[#allocation14] sm:$0xff] %v739
    // Predicated region
    $region306: #{tpu_custom_call.1} parent=1 // pred_check
      _
    $region307: #{tpu_custom_call.1} parent=1 // pred_check_branch
      %742 = sbr.rel (0) target = $region309
    $region308: #{tpu_custom_call.1} parent=1 // pred_region
      %s744 = ssub.s32 128, 128
      %745 = vsyncadd [#allocation11], %s744
      %s747 = sshll.u32 [#allocation10], 4
      %s748 = int_to_ptr.vmem [resolvable:$true] %s747
      %750 = dma.vmem_to_hbm [thread:$0]  %s748, 128, %s5, [#allocation11]
    $region309: #{tpu_custom_call.1} parent=1 // pred_fallthru
      _
    // Predicated region
    $region310: #{tpu_custom_call.1} parent=1 // pred_check
      _
    $region311: #{tpu_custom_call.1} parent=1 // pred_check_branch
      %752 = sbr.rel (0) target = $region313
    $region312: #{tpu_custom_call.1} parent=1 // pred_region
      %s754 = ssub.s32 128, 128
      %755 = vsyncadd [#allocation13], %s754
      %s757 = sshll.u32 [#allocation12], 4
      %s758 = int_to_ptr.vmem [resolvable:$true] %s757
      %760 = dma.vmem_to_hbm [thread:$0]  %s758, 128, %s6, [#allocation13]
    $region313: #{tpu_custom_call.1} parent=1 // pred_fallthru
      _
    // Predicated region
    $region314: #{tpu_custom_call.1} parent=1 // pred_check
      _
    $region315: #{tpu_custom_call.1} parent=1 // pred_check_branch
      %762 = sbr.rel (0) target = $region317
    $region316: #{tpu_custom_call.1} parent=1 // pred_region
      %s764 = ssub.s32 128, 128
      %765 = vsyncadd [#allocation13], %s764
      %s767 = sshll.u32 [#allocation14], 4
      %s768 = int_to_ptr.vmem [resolvable:$true] %s767
      %770 = dma.vmem_to_hbm [thread:$0]  %s768, 128, %s7, [#allocation13]
    $region317: #{tpu_custom_call.1} parent=1 // pred_fallthru
      _
    // Predicated region
    $region318: #{tpu_custom_call.1} parent=1 // pred_check
      _
    $region319: #{tpu_custom_call.1} parent=1 // pred_check_branch
      %772 = sbr.rel (0) target = $region321
    $region320: #{tpu_custom_call.1} parent=1 // pred_region
      %773 = dma.done [#allocation11], 128
    $region321: #{tpu_custom_call.1} parent=1 // pred_fallthru
      _
    // Predicated region
    $region322: #{tpu_custom_call.1} parent=1 // pred_check
      _
    $region323: #{tpu_custom_call.1} parent=1 // pred_check_branch
      %775 = sbr.rel (0) target = $region325
    $region324: #{tpu_custom_call.1} parent=1 // pred_region
      %776 = dma.done [#allocation13], 128
    $region325: #{tpu_custom_call.1} parent=1 // pred_fallthru
      _
    // Predicated region
    $region326: #{tpu_custom_call.1} parent=1 // pred_check
      _
    $region327: #{tpu_custom_call.1} parent=1 // pred_check_branch
      %778 = sbr.rel (0) target = $region329
    $region328: #{tpu_custom_call.1} parent=1 // pred_region
      %779 = dma.done [#allocation13], 128
    $region329: #{tpu_custom_call.1} parent=1 // pred_fallthru
      _
    %780 = vsyncpa [#allocation11], 1
    %781 = vsyncpa [#allocation13], 1
  %782 = vsyncmov [#allocation5]
  %s783 = vpop.sfrf %782
  %p784 = scmp.eq.s32.totalorder %s783, 0
  %p785 = pneg %p784
  %787 = shalt.err (%p785)
  %s788 = scalar_lea.sflag [#allocation5], 1
  %789 = vsyncmov %s788
  %s790 = vpop.sfrf %789
  %p791 = scmp.eq.s32.totalorder %s790, 0
  %p792 = pneg %p791
  %794 = shalt.err (%p792)
  %s795 = scalar_lea.sflag [#allocation5], 2
  %796 = vsyncmov %s795
  %s797 = vpop.sfrf %796
  %p798 = scmp.eq.s32.totalorder %s797, 0
  %p799 = pneg %p798
  %801 = shalt.err (%p799)
  %s802 = scalar_lea.sflag [#allocation5], 3
  %803 = vsyncmov %s802
  %s804 = vpop.sfrf %803
  %p805 = scmp.eq.s32.totalorder %s804, 0
  %p806 = pneg %p805
  %808 = shalt.err (%p806)
  %s809 = scalar_lea.sflag [#allocation5], 4
  %810 = vsyncmov %s809
  %s811 = vpop.sfrf %810
  %p812 = scmp.eq.s32.totalorder %s811, 0
  %p813 = pneg %p812
  %815 = shalt.err (%p813)
  %s816 = scalar_lea.sflag [#allocation5], 5
  %817 = vsyncmov %s816
  %s818 = vpop.sfrf %817
  %p819 = scmp.eq.s32.totalorder %s818, 0
  %p820 = pneg %p819
  %822 = shalt.err (%p820)
  %s823 = scalar_lea.sflag [#allocation5], 6
  %824 = vsyncmov %s823
  %s825 = vpop.sfrf %824
  %p826 = scmp.eq.s32.totalorder %s825, 0
  %p827 = pneg %p826
  %829 = shalt.err (%p827)
  %s830 = scalar_lea.sflag [#allocation5], 7
  %831 = vsyncmov %s830
  %s832 = vpop.sfrf %831
  %p833 = scmp.eq.s32.totalorder %s832, 0
  %p834 = pneg %p833
  %836 = shalt.err (%p834)
  %s837 = scalar_lea.sflag [#allocation5], 8
  %838 = vsyncmov %s837
  %s839 = vpop.sfrf %838
  %p840 = scmp.eq.s32.totalorder %s839, 0
  %p841 = pneg %p840
  %843 = shalt.err (%p841)
  %s844 = scalar_lea.sflag [#allocation5], 9
  %845 = vsyncmov %s844
  %s846 = vpop.sfrf %845
  %p847 = scmp.eq.s32.totalorder %s846, 0
  %p848 = pneg %p847
  %850 = shalt.err (%p848)
  %s851 = scalar_lea.sflag [#allocation5], 10
  %852 = vsyncmov %s851
  %s853 = vpop.sfrf %852
  %p854 = scmp.eq.s32.totalorder %s853, 0
  %p855 = pneg %p854
  %857 = shalt.err (%p855)
  %s858 = scalar_lea.sflag [#allocation5], 11
  %859 = vsyncmov %s858
  %s860 = vpop.sfrf %859
  %p861 = scmp.eq.s32.totalorder %s860, 0
  %p862 = pneg %p861
  %864 = shalt.err (%p862)
  %s865 = scalar_lea.sflag [#allocation5], 12
  %866 = vsyncmov %s865
  %s867 = vpop.sfrf %866
  %p868 = scmp.eq.s32.totalorder %s867, 0
  %p869 = pneg %p868
  %871 = shalt.err (%p869)
  %s872 = scalar_lea.sflag [#allocation5], 13
  %873 = vsyncmov %s872
  %s874 = vpop.sfrf %873
  %p875 = scmp.eq.s32.totalorder %s874, 0
  %p876 = pneg %p875
  %878 = shalt.err (%p876)
  %s879 = scalar_lea.sflag [#allocation5], 14
  %880 = vsyncmov %s879
  %s881 = vpop.sfrf %880
  %p882 = scmp.eq.s32.totalorder %s881, 0
  %p883 = pneg %p882
  %885 = shalt.err (%p883)
  %s886 = scalar_lea.sflag [#allocation5], 15
  %887 = vsyncmov %s886
  %s888 = vpop.sfrf %887
  %p889 = scmp.eq.s32.totalorder %s888, 0
  %p890 = pneg %p889
  %892 = shalt.err (%p890)
  %s893 = scalar_lea.sflag [#allocation5], 16
  %894 = vsyncmov %s893
  %s895 = vpop.sfrf %894
  %p896 = scmp.eq.s32.totalorder %s895, 0
  %p897 = pneg %p896
  %899 = shalt.err (%p897)
  %s900 = scalar_lea.sflag [#allocation5], 17
  %901 = vsyncmov %s900
  %s902 = vpop.sfrf %901
  %p903 = scmp.eq.s32.totalorder %s902, 0
  %p904 = pneg %p903
  %906 = shalt.err (%p904)
  %s907 = scalar_lea.sflag [#allocation5], 18
  %908 = vsyncmov %s907
  %s909 = vpop.sfrf %908
  %p910 = scmp.eq.s32.totalorder %s909, 0
  %p911 = pneg %p910
  %913 = shalt.err (%p911)
  %s914 = scalar_lea.sflag [#allocation5], 19
  %915 = vsyncmov %s914
  %s916 = vpop.sfrf %915
  %p917 = scmp.eq.s32.totalorder %s916, 0
  %p918 = pneg %p917
  %920 = shalt.err (%p918)
  %s921 = scalar_lea.sflag [#allocation5], 20
  %922 = vsyncmov %s921
  %s923 = vpop.sfrf %922
  %p924 = scmp.eq.s32.totalorder %s923, 0
  %p925 = pneg %p924
  %927 = shalt.err (%p925)
  %s928 = scalar_lea.sflag [#allocation5], 21
  %929 = vsyncmov %s928
  %s930 = vpop.sfrf %929
  %p931 = scmp.eq.s32.totalorder %s930, 0
  %p932 = pneg %p931
  %934 = shalt.err (%p932)
  %s935 = scalar_lea.sflag [#allocation5], 22
  %936 = vsyncmov %s935
  %s937 = vpop.sfrf %936
  %p938 = scmp.eq.s32.totalorder %s937, 0
  %p939 = pneg %p938
  %941 = shalt.err (%p939)
  %s942 = scalar_lea.sflag [#allocation5], 23
  %943 = vsyncmov %s942
  %s944 = vpop.sfrf %943
  %p945 = scmp.eq.s32.totalorder %s944, 0
  %p946 = pneg %p945
  %948 = shalt.err (%p946)

</llo_original>
